<compile_context>
chip_gen: v6e
topology: v6e:2x2x1
jax: 0.10.0
libtpu: 0.0.40
codegen_flags: <defaults>
</compile_context>

<pallas_src>
import functools

import jax
import jax.numpy as jnp
from jax.experimental import pallas as pl
from jax.experimental.pallas import tpu as pltpu


F_PAD = 128  # lane-dense padded feature width for X / W / b / H / out


# ----------------------------------------------------------------------------
# Fused two-layer GCN kernel
# grid = (layer, row_block, col_block)  --  col_block is the A_hat reduction
# ----------------------------------------------------------------------------
def _fused_gcn_kernel(a_ref, x_ref, w1_ref, b1_ref, w2_ref, b2_ref,
                      o_ref, pw_ref, h_ref, acc_ref, *, tm, tk):
    layer = pl.program_id(0)
    i = pl.program_id(1)
    k = pl.program_id(2)
    nk = pl.num_programs(2)

    first_step_of_layer = jnp.logical_and(i == 0, k == 0)

    # --- per-layer prologue: project node features ONCE (hoisted out of the
    #     A_hat K reduction), kept resident in the `pw` VMEM scratch ---------
    @pl.when(jnp.logical_and(first_step_of_layer, layer == 0))
    def _():
        # XW1 : [N_pad, F_PAD]
        pw_ref[...] = jnp.dot(x_ref[...], w1_ref[...],
                              preferred_element_type=jnp.float32)

    @pl.when(jnp.logical_and(first_step_of_layer, layer == 1))
    def _():
        # HW2 : [N_pad, F_PAD]  (H was produced by the layer-0 phase)
        pw_ref[...] = jnp.dot(h_ref[...], w2_ref[...],
                              preferred_element_type=jnp.float32)

    # --- K reduction: acc += A_hat[i, k] @ PW[k] ----------------------------
    @pl.when(k == 0)
    def _():
        acc_ref[...] = jnp.zeros_like(acc_ref)

    k_off = pl.multiple_of(k * tk, tk)
    acc_ref[...] += jnp.dot(a_ref[...], pw_ref[pl.ds(k_off, tk), :],
                            preferred_element_type=jnp.float32)

    # --- finalize row block: bias (+ ReLU for layer 0), once per row block --
    @pl.when(jnp.logical_and(k == nk - 1, layer == 0))
    def _():
        h_blk = jnp.maximum(acc_ref[...] + b1_ref[...], 0.0)
        i_off = pl.multiple_of(i * tm, tm)
        h_ref[pl.ds(i_off, tm), :] = h_blk   # hidden activations stay in VMEM
        o_ref[...] = h_blk                   # keep out buffer defined (overwritten by layer 1)

    @pl.when(jnp.logical_and(k == nk - 1, layer == 1))
    def _():
        o_ref[...] = acc_ref[...] + b2_ref[...]


# ----------------------------------------------------------------------------
# Glue: symmetrically-normalized dense adjacency (padded), built in plain JAX
# ----------------------------------------------------------------------------
def gcn_norm_dense_adj(edge_index, num_nodes, num_nodes_padded):
    """edge_index: int32 [2, E] (source, target). Returns [N_pad, N_pad] f32."""
    src = edge_index[0]
    dst = edge_index[1]
    loop = jnp.arange(num_nodes, dtype=edge_index.dtype)   # self loops, real nodes only
    src = jnp.concatenate([src, loop])
    dst = jnp.concatenate([dst, loop])
    a = jnp.zeros((num_nodes_padded, num_nodes_padded), dtype=jnp.float32)
    a = a.at[dst, src].add(1.0)             # A[i, j] = 1 for edge j -> i
    deg = a.sum(axis=1)                     # in-degree incl. self loop (padded rows: 0)
    dinv = jnp.where(deg > 0.0, jax.lax.rsqrt(deg), 0.0)
    return dinv[:, None] * a * dinv[None, :]


def _round_up(n, m):
    return ((n + m - 1) // m) * m


def _pick_tile(n_pad, target):
    """Largest multiple of 128 that divides n_pad and is <= target."""
    t = (min(target, n_pad) // 128) * 128
    while n_pad % t != 0:
        t -= 128
    return t


def _pad2(a, rows, cols):
    return jnp.pad(a, ((0, rows - a.shape[0]), (0, cols - a.shape[1])))


# ----------------------------------------------------------------------------
# Full GCN forward:  conv1 -> relu -> conv2   (single fused pallas_call)
# ----------------------------------------------------------------------------
def gcn_forward(x, edge_index, params, *, tm_target=256, tk_target=512):
    n, f_in = x.shape
    f_out = params["w2"].shape[1]

    n_pad = _round_up(max(n, 128), 128)
    tm = _pick_tile(n_pad, tm_target)
    tk = _pick_tile(n_pad, tk_target)

    a_hat = gcn_norm_dense_adj(edge_index, n, n_pad)        # [n_pad, n_pad] f32

    # Lane-dense zero padding of features / weights / biases to 128 lanes.
    x_p = _pad2(x.astype(jnp.float32), n_pad, F_PAD)
    w1_p = _pad2(params["w1"], F_PAD, F_PAD)
    w2_p = _pad2(params["w2"], F_PAD, F_PAD)
    b1_p = _pad2(params["b1"].reshape(1, -1), 1, F_PAD)
    b2_p = _pad2(params["b2"].reshape(1, -1), 1, F_PAD)

    # VMEM footprint (bytes): A tiles (x2 buffers), resident X/W/b, out block
    # (x2), pw + h scratches, accumulator.
    vmem_bytes = 4 * (
        2 * tm * tk
        + n_pad * F_PAD
        + 2 * F_PAD * F_PAD + 2 * F_PAD
        + 2 * tm * F_PAD
        + 2 * n_pad * F_PAD
        + tm * F_PAD
    )
    vmem_limit = min(max(2 * vmem_bytes, 16 * 1024 * 1024), 60 * 1024 * 1024)

    kernel = functools.partial(_fused_gcn_kernel, tm=tm, tk=tk)
    grid = (2, n_pad // tm, n_pad // tk)

    out_p = pl.pallas_call(
        kernel,
        out_shape=jax.ShapeDtypeStruct((n_pad, F_PAD), jnp.float32),
        grid_spec=pltpu.PrefetchScalarGridSpec(
            num_scalar_prefetch=0,
            grid=grid,
            in_specs=[
                pl.BlockSpec((tm, tk), lambda l, i, k: (i, k)),        # A_hat tile (streamed)
                pl.BlockSpec((n_pad, F_PAD), lambda l, i, k: (0, 0)),  # X (resident)
                pl.BlockSpec((F_PAD, F_PAD), lambda l, i, k: (0, 0)),  # W1
                pl.BlockSpec((1, F_PAD), lambda l, i, k: (0, 0)),      # b1
                pl.BlockSpec((F_PAD, F_PAD), lambda l, i, k: (0, 0)),  # W2
                pl.BlockSpec((1, F_PAD), lambda l, i, k: (0, 0)),      # b2
            ],
            out_specs=pl.BlockSpec((tm, F_PAD), lambda l, i, k: (i, 0)),
            scratch_shapes=[
                pltpu.VMEM((n_pad, F_PAD), jnp.float32),   # pw : XW1 (layer 0) / HW2 (layer 1)
                pltpu.VMEM((n_pad, F_PAD), jnp.float32),   # h  : ReLU hidden activations
                pltpu.VMEM((tm, F_PAD), jnp.float32),      # acc: row-block accumulator
            ],
        ),
        compiler_params=pltpu.CompilerParams(
            # Row axis cannot be "parallel": layer 1 reads the full H scratch
            # written by all row blocks of layer 0 (per-core VMEM on v7x).
            dimension_semantics=("arbitrary", "arbitrary", "arbitrary"),
            vmem_limit_bytes=vmem_limit,
        ),
    )(a_hat, x_p, w1_p, b1_p, w2_p, b2_p)

    return out_p[:n, :f_out]


def init_params(key, f_in=4, f_hidden=16, f_out=2):
    k1, k2 = jax.random.split(key)

    def glorot(k, shape):
        limit = jnp.sqrt(6.0 / (shape[0] + shape[1]))
        return jax.random.uniform(k, shape, jnp.float32, -limit, limit)

    return {
        "w1": glorot(k1, (f_in, f_hidden)),
        "b1": jnp.zeros((f_hidden,), jnp.float32),
        "w2": glorot(k2, (f_hidden, f_out)),
        "b2": jnp.zeros((f_out,), jnp.float32),
    }


if __name__ == "__main__":
    key = jax.random.PRNGKey(0)
    k_params, k_x = jax.random.split(key)

    N = 8          # number of graph nodes
    F_IN = 4       # GCNConv(4, 16) input features

    params = init_params(k_params, F_IN, 16, 2)

    # Deterministic node features [N, F_IN]
    x = jax.random.normal(k_x, (N, F_IN), dtype=jnp.float32)

    # Deterministic ring graph (undirected), edge_index [2, E]
    fwd = jnp.stack([jnp.arange(N), (jnp.arange(N) + 1) % N])
    bwd = jnp.stack([(jnp.arange(N) + 1) % N, jnp.arange(N)])
    edge_index = jnp.concatenate([fwd, bwd], axis=1).astype(jnp.int32)  # [2, 16]

    out = gcn_forward(x, edge_index, params)
    out = jax.block_until_ready(out)
    assert out.shape == (N, 2)

    # Plain-JAX reference (identical math, unpadded) — tolerance check.
    a_ref = gcn_norm_dense_adj(edge_index, N, N)
    h_ref = jnp.maximum(a_ref @ (x @ params["w1"]) + params["b1"], 0.0)
    ref = a_ref @ (h_ref @ params["w2"]) + params["b2"]
    assert jnp.allclose(out, ref, atol=1e-4, rtol=1e-4)

    print("KERNEL_OK")
</pallas_src>

<mosaic_0001>
module attributes {stable_mosaic.version = 11 : i64} {
  func.func @_fused_gcn_kernel(%arg0: i32, %arg1: i32, %arg2: i32, %arg3: memref<128x128xf32, #tpu.memory_space<vmem>>, %arg4: memref<128x128xf32, #tpu.memory_space<vmem>>, %arg5: memref<128x128xf32, #tpu.memory_space<vmem>>, %arg6: memref<1x128xf32, #tpu.memory_space<vmem>>, %arg7: memref<128x128xf32, #tpu.memory_space<vmem>>, %arg8: memref<1x128xf32, #tpu.memory_space<vmem>>, %arg9: memref<128x128xf32, #tpu.memory_space<vmem>>, %arg10: memref<128x128xf32, #tpu.memory_space<vmem>>, %arg11: memref<128x128xf32, #tpu.memory_space<vmem>>, %arg12: memref<128x128xf32, #tpu.memory_space<vmem>>) attributes {dimension_semantics = [#tpu.dimension_semantics<arbitrary>, #tpu.dimension_semantics<arbitrary>, #tpu.dimension_semantics<arbitrary>], iteration_bounds = array<i64: 2, 1, 1>, scalar_prefetch = 0 : i64, scratch_operands = 3 : i64, tpu.core_type = #tpu.core_type<tc>, window_params = [{transform_indices = @transform_0, window_bounds = array<i64: 128, 128>}, {pipeline_mode = #tpu.pipeline_mode<synchronous>, transform_indices = @transform_1, window_bounds = array<i64: 128, 128>}, {pipeline_mode = #tpu.pipeline_mode<synchronous>, transform_indices = @transform_2, window_bounds = array<i64: 128, 128>}, {pipeline_mode = #tpu.pipeline_mode<synchronous>, transform_indices = @transform_3, window_bounds = array<i64: 1, 128>}, {pipeline_mode = #tpu.pipeline_mode<synchronous>, transform_indices = @transform_4, window_bounds = array<i64: 128, 128>}, {pipeline_mode = #tpu.pipeline_mode<synchronous>, transform_indices = @transform_5, window_bounds = array<i64: 1, 128>}, {transform_indices = @transform_6, window_bounds = array<i64: 128, 128>}]} {
    %c0_i32 = arith.constant 0 : i32
    %0 = arith.cmpi eq, %arg1, %c0_i32 : i32
    %c0_i32_0 = arith.constant 0 : i32
    %1 = arith.cmpi eq, %arg2, %c0_i32_0 : i32
    %2 = arith.andi %0, %1 : i1
    %c0_i32_1 = arith.constant 0 : i32
    %3 = arith.cmpi eq, %arg0, %c0_i32_1 : i32
    %4 = arith.andi %2, %3 : i1
    %5 = arith.extui %4 : i1 to i32
    %c0_i32_2 = arith.constant 0 : i32
    %6 = arith.cmpi ne, %5, %c0_i32_2 : i32
    scf.if %6 {
      %c0_18 = arith.constant 0 : index
      %c0_19 = arith.constant 0 : index
      %33 = vector.load %arg4[%c0_18, %c0_19] : memref<128x128xf32, #tpu.memory_space<vmem>>, vector<128x128xf32>
      %c0_20 = arith.constant 0 : index
      %c0_21 = arith.constant 0 : index
      %34 = vector.load %arg5[%c0_20, %c0_21] : memref<128x128xf32, #tpu.memory_space<vmem>>, vector<128x128xf32>
      %cst_22 = arith.constant dense<0.000000e+00> : vector<128x128xf32>
      %35 = tpu.matmul %33, %34, %cst_22 {dimension_numbers = #tpu.dot_dimension_numbers<[1], [0], [0], [1], [0, 0, 1, 1], [], []>} : vector<128x128xf32>, vector<128x128xf32>, vector<128x128xf32> -> vector<128x128xf32>
      %c0_23 = arith.constant 0 : index
      %c0_24 = arith.constant 0 : index
      %36 = vector.load %arg10[%c0_23, %c0_24] : memref<128x128xf32, #tpu.memory_space<vmem>>, vector<128x128xf32>
      tpu.vector_store %arg10[%c0_23, %c0_24], %35 {strides = array<i32>} : memref<128x128xf32, #tpu.memory_space<vmem>>, vector<128x128xf32>,
    } else {
    }
    %c1_i32 = arith.constant 1 : i32
    %7 = arith.cmpi eq, %arg0, %c1_i32 : i32
    %8 = arith.andi %2, %7 : i1
    %9 = arith.extui %8 : i1 to i32
    %c0_i32_3 = arith.constant 0 : i32
    %10 = arith.cmpi ne, %9, %c0_i32_3 : i32
    scf.if %10 {
      %c0_18 = arith.constant 0 : index
      %c0_19 = arith.constant 0 : index
      %33 = vector.load %arg11[%c0_18, %c0_19] : memref<128x128xf32, #tpu.memory_space<vmem>>, vector<128x128xf32>
      %c0_20 = arith.constant 0 : index
      %c0_21 = arith.constant 0 : index
      %34 = vector.load %arg7[%c0_20, %c0_21] : memref<128x128xf32, #tpu.memory_space<vmem>>, vector<128x128xf32>
      %cst_22 = arith.constant dense<0.000000e+00> : vector<128x128xf32>
      %35 = tpu.matmul %33, %34, %cst_22 {dimension_numbers = #tpu.dot_dimension_numbers<[1], [0], [0], [1], [0, 0, 1, 1], [], []>} : vector<128x128xf32>, vector<128x128xf32>, vector<128x128xf32> -> vector<128x128xf32>
      %c0_23 = arith.constant 0 : index
      %c0_24 = arith.constant 0 : index
      %36 = vector.load %arg10[%c0_23, %c0_24] : memref<128x128xf32, #tpu.memory_space<vmem>>, vector<128x128xf32>
      tpu.vector_store %arg10[%c0_23, %c0_24], %35 {strides = array<i32>} : memref<128x128xf32, #tpu.memory_space<vmem>>, vector<128x128xf32>,
    } else {
    }
    %c0_i32_4 = arith.constant 0 : i32
    %11 = arith.cmpi eq, %arg2, %c0_i32_4 : i32
    %12 = arith.extui %11 : i1 to i32
    %c0_i32_5 = arith.constant 0 : i32
    %13 = arith.cmpi ne, %12, %c0_i32_5 : i32
    scf.if %13 {
      %cst_18 = arith.constant 0.000000e+00 : f32
      %33 = vector.broadcast %cst_18 : f32 to vector<128x128xf32>
      %c0_19 = arith.constant 0 : index
      %c0_20 = arith.constant 0 : index
      %34 = vector.load %arg12[%c0_19, %c0_20] : memref<128x128xf32, #tpu.memory_space<vmem>>, vector<128x128xf32>
      tpu.vector_store %arg12[%c0_19, %c0_20], %33 {strides = array<i32>} : memref<128x128xf32, #tpu.memory_space<vmem>>, vector<128x128xf32>,
    } else {
    }
    %c128_i32 = arith.constant 128 : i32
    %14 = arith.muli %arg2, %c128_i32 : i32
    %15 = tpu.assume_multiple %14, 128 : i32
    %c0 = arith.constant 0 : index
    %c0_6 = arith.constant 0 : index
    %16 = vector.load %arg12[%c0, %c0_6] : memref<128x128xf32, #tpu.memory_space<vmem>>, vector<128x128xf32>
    %c0_7 = arith.constant 0 : index
    %c0_8 = arith.constant 0 : index
    %17 = vector.load %arg3[%c0_7, %c0_8] : memref<128x128xf32, #tpu.memory_space<vmem>>, vector<128x128xf32>
    %18 = arith.index_cast %15 : i32 to index
    %c0_9 = arith.constant 0 : index
    %19 = vector.load %arg10[%18, %c0_9] : memref<128x128xf32, #tpu.memory_space<vmem>>, vector<128x128xf32>
    %cst = arith.constant dense<0.000000e+00> : vector<128x128xf32>
    %20 = tpu.matmul %17, %19, %cst {dimension_numbers = #tpu.dot_dimension_numbers<[1], [0], [0], [1], [0, 0, 1, 1], [], []>} : vector<128x128xf32>, vector<128x128xf32>, vector<128x128xf32> -> vector<128x128xf32>
    %21 = arith.addf %16, %20 : vector<128x128xf32>
    %c0_10 = arith.constant 0 : index
    %c0_11 = arith.constant 0 : index
    %22 = vector.load %arg12[%c0_10, %c0_11] : memref<128x128xf32, #tpu.memory_space<vmem>>, vector<128x128xf32>
    tpu.vector_store %arg12[%c0_10, %c0_11], %21 {strides = array<i32>} : memref<128x128xf32, #tpu.memory_space<vmem>>, vector<128x128xf32>,
    %c0_i32_12 = arith.constant 0 : i32
    %23 = arith.cmpi eq, %arg2, %c0_i32_12 : i32
    %c0_i32_13 = arith.constant 0 : i32
    %24 = arith.cmpi eq, %arg0, %c0_i32_13 : i32
    %25 = arith.andi %23, %24 : i1
    %26 = arith.extui %25 : i1 to i32
    %c0_i32_14 = arith.constant 0 : i32
    %27 = arith.cmpi ne, %26, %c0_i32_14 : i32
    scf.if %27 {
      %c0_18 = arith.constant 0 : index
      %c0_19 = arith.constant 0 : index
      %33 = vector.load %arg12[%c0_18, %c0_19] : memref<128x128xf32, #tpu.memory_space<vmem>>, vector<128x128xf32>
      %c0_20 = arith.constant 0 : index
      %c0_21 = arith.constant 0 : index
      %34 = vector.load %arg6[%c0_20, %c0_21] : memref<1x128xf32, #tpu.memory_space<vmem>>, vector<1x128xf32>
      %35 = vector.broadcast %34 : vector<1x128xf32> to vector<128x128xf32>
      %36 = arith.addf %33, %35 : vector<128x128xf32>
      %cst_22 = arith.constant 0.000000e+00 : f32
      %37 = vector.broadcast %cst_22 : f32 to vector<128x128xf32>
      %38 = arith.maximumf %36, %37 : vector<128x128xf32>
      %c128_i32_23 = arith.constant 128 : i32
      %39 = arith.muli %arg1, %c128_i32_23 : i32
      %40 = tpu.assume_multiple %39, 128 : i32
      %41 = arith.index_cast %40 : i32 to index
      %c0_24 = arith.constant 0 : index
      %42 = vector.load %arg11[%41, %c0_24] : memref<128x128xf32, #tpu.memory_space<vmem>>, vector<128x128xf32>
      tpu.vector_store %arg11[%41, %c0_24], %38 {strides = array<i32>} : memref<128x128xf32, #tpu.memory_space<vmem>>, vector<128x128xf32>,
      %c0_25 = arith.constant 0 : index
      %c0_26 = arith.constant 0 : index
      %43 = vector.load %arg9[%c0_25, %c0_26] : memref<128x128xf32, #tpu.memory_space<vmem>>, vector<128x128xf32>
      tpu.vector_store %arg9[%c0_25, %c0_26], %38 {strides = array<i32>} : memref<128x128xf32, #tpu.memory_space<vmem>>, vector<128x128xf32>,
    } else {
    }
    %c0_i32_15 = arith.constant 0 : i32
    %28 = arith.cmpi eq, %arg2, %c0_i32_15 : i32
    %c1_i32_16 = arith.constant 1 : i32
    %29 = arith.cmpi eq, %arg0, %c1_i32_16 : i32
    %30 = arith.andi %28, %29 : i1
    %31 = arith.extui %30 : i1 to i32
    %c0_i32_17 = arith.constant 0 : i32
    %32 = arith.cmpi ne, %31, %c0_i32_17 : i32
    scf.if %32 {
      %c0_18 = arith.constant 0 : index
      %c0_19 = arith.constant 0 : index
      %33 = vector.load %arg12[%c0_18, %c0_19] : memref<128x128xf32, #tpu.memory_space<vmem>>, vector<128x128xf32>
      %c0_20 = arith.constant 0 : index
      %c0_21 = arith.constant 0 : index
      %34 = vector.load %arg8[%c0_20, %c0_21] : memref<1x128xf32, #tpu.memory_space<vmem>>, vector<1x128xf32>
      %35 = vector.broadcast %34 : vector<1x128xf32> to vector<128x128xf32>
      %36 = arith.addf %33, %35 : vector<128x128xf32>
      %c0_22 = arith.constant 0 : index
      %c0_23 = arith.constant 0 : index
      %37 = vector.load %arg9[%c0_22, %c0_23] : memref<128x128xf32, #tpu.memory_space<vmem>>, vector<128x128xf32>
      tpu.vector_store %arg9[%c0_22, %c0_23], %36 {strides = array<i32>} : memref<128x128xf32, #tpu.memory_space<vmem>>, vector<128x128xf32>,
    } else {
    }
    return
  }
  func.func @transform_0(%arg0: i32, %arg1: i32, %arg2: i32) -> (i32, i32) {
    %c0_i32 = arith.constant 0 : i32
    return %arg1, %arg2 : i32, i32
  }
  func.func @transform_1(%arg0: i32, %arg1: i32, %arg2: i32) -> (i32, i32) {
    %c0_i32 = arith.constant 0 : i32
    %c0_i32_0 = arith.constant 0 : i32
    %c0_i32_1 = arith.constant 0 : i32
    return %c0_i32, %c0_i32_0 : i32, i32
  }
  func.func @transform_2(%arg0: i32, %arg1: i32, %arg2: i32) -> (i32, i32) {
    %c0_i32 = arith.constant 0 : i32
    %c0_i32_0 = arith.constant 0 : i32
    %c0_i32_1 = arith.constant 0 : i32
    return %c0_i32, %c0_i32_0 : i32, i32
  }
  func.func @transform_3(%arg0: i32, %arg1: i32, %arg2: i32) -> (i32, i32) {
    %c0_i32 = arith.constant 0 : i32
    %c0_i32_0 = arith.constant 0 : i32
    %c0_i32_1 = arith.constant 0 : i32
    return %c0_i32, %c0_i32_0 : i32, i32
  }
  func.func @transform_4(%arg0: i32, %arg1: i32, %arg2: i32) -> (i32, i32) {
    %c0_i32 = arith.constant 0 : i32
    %c0_i32_0 = arith.constant 0 : i32
    %c0_i32_1 = arith.constant 0 : i32
    return %c0_i32, %c0_i32_0 : i32, i32
  }
  func.func @transform_5(%arg0: i32, %arg1: i32, %arg2: i32) -> (i32, i32) {
    %c0_i32 = arith.constant 0 : i32
    %c0_i32_0 = arith.constant 0 : i32
    %c0_i32_1 = arith.constant 0 : i32
    return %c0_i32, %c0_i32_0 : i32, i32
  }
  func.func @transform_6(%arg0: i32, %arg1: i32, %arg2: i32) -> (i32, i32) {
    %c0_i32 = arith.constant 0 : i32
    %c0_i32_0 = arith.constant 0 : i32
    return %arg1, %c0_i32 : i32, i32
  }
}

</mosaic_0001>

<llo_original>
// kernel: tpu_custom_call.1
$region0: #{tpu_custom_call.1}
  #allocation0 [shape = 'u32[]', space=smem, size = 0x4, offset = 0x4, fixed_abs, tag = 'smem constant byte address 0x4 - core index']
  #allocation1 [shape = 'u32[144,128]{1,0:T(1,128)}', space=vmem, size = 0x12000, scoped, tag = 'internal scratch']
  #allocation2 [shape = 'f32[128,128]{1,0:T(8,128)}', space=vmem, size = 0x10000, scoped, tag = 'scratch operand']
  #allocation3 [shape = 'f32[128,128]{1,0:T(8,128)}', space=vmem, size = 0x10000, scoped, tag = 'scratch operand']
  #allocation4 [shape = 'f32[128,128]{1,0:T(8,128)}', space=vmem, size = 0x10000, scoped, tag = 'scratch operand']
  %s0 = inlined_call_operand.hbm [shape: f32[128,128], index: 0, kind: input, shape index: {}]
  %s1 = inlined_call_operand.hbm [shape: f32[128,128], index: 1, kind: input, shape index: {}]
  %s2 = inlined_call_operand.hbm [shape: f32[128,128], index: 2, kind: input, shape index: {}]
  %s3 = inlined_call_operand.vmem [shape: f32[1,128], index: 3, kind: input, shape index: {}]
  %s4 = inlined_call_operand.hbm [shape: f32[128,128], index: 4, kind: input, shape index: {}]
  %s5 = inlined_call_operand.vmem [shape: f32[1,128], index: 5, kind: input, shape index: {}]
  %s6 = inlined_call_operand.hbm [shape: f32[128,128], index: 6, kind: output, shape index: {}]
  %s7 = sld [smem:[#allocation0]]
  $region93: #{tpu_custom_call.1} parent=0
    _
  %s9 = ssub.s32 1, %s7
  %s10 = scalar_select 0, %s9, %s7
  $region1: #{tpu_custom_call.1} parent=0
    #allocation5 [shape = 'u8[65536]{0}', space=vmem, size = 0x10000, scoped, tag = 'input window, operand 0, single buffered']
    #allocation6 [shape = 's32[2]{0}', space=sflag, size = 0x8, scoped, tag = 'scoped memory for tpu_custom_call.1']
    #allocation7 [shape = 's32[2]{0}', space=sflag, size = 0x8, scoped, tag = 'scoped memory for tpu_custom_call.1']
    #allocation8 [shape = 'u8[65536]{0}', space=vmem, size = 0x10000, scoped, tag = 'input window, operand 1, single buffered']
    #allocation9 [shape = 's32[1]{0}', space=sflag, size = 0x4, scoped, tag = 'scoped memory for tpu_custom_call.1']
    #allocation10 [shape = 'u8[65536]{0}', space=vmem, size = 0x10000, scoped, tag = 'input window, operand 2, single buffered']
    #allocation11 [shape = 'u8[65536]{0}', space=vmem, size = 0x10000, scoped, tag = 'input window, operand 4, single buffered']
    #allocation12 [shape = 's32[1]{0}', space=sflag, size = 0x4, scoped, tag = 'scoped memory for tpu_custom_call.1']
    #allocation13 [shape = 'u8[65536]{0}', space=vmem, size = 0x10000, scoped, tag = 'output window, operand 0, single buffered']
    %11 = vsyncpa [#allocation6], 0
    %12 = vsyncpa [#allocation9], 0
    %13 = vsyncpa [#allocation12], 0
    %14 = vsyncpa [#allocation7], 0
    loop: start=0, step=1, limit=4
    $region2: #{tpu_custom_call.1} parent=1 // loop_pre_header
      _
    $region3: #{tpu_custom_call.1} parent=1 // loop_header
      %s16 = sphi 0, %s20
      %p17 = scmp.ge.s32.totalorder %s16, 4
      %s23 = sphi 0, %s42
      %s24 = sphi 0, %s38
      %s25 = sphi 0, %s34
      %s26 = sphi 0, %s23
      %s27 = sphi 0, %s24
      %s28 = sphi 0, %s25
      %s29 = sphi 0, %s26
      %s30 = sphi 0, %s27
      %s31 = sphi 0, %s28
      %s47 = sphi 0, %s49
      %s50 = sphi 0, %s47
      %s51 = sphi 0, %s50
      %s67 = sphi 0, %s51
      %s71 = sphi 0, %s71
      %s73 = sphi 0, %s71
      %s74 = sphi 0, %s73
      %s88 = sphi 0, %s74
      %s92 = sphi 0, %s92
      %s94 = sphi 0, %s92
      %s95 = sphi 0, %s94
      %s109 = sphi 0, %s95
      %s113 = sphi 0, %s113
      %s115 = sphi 0, %s113
      %s116 = sphi 0, %s115
      %s130 = sphi 0, %s116
      %s134 = sphi 0, %s134
      %s136 = sphi 0, %s134
      %s137 = sphi 0, %s136
      %s151 = sphi 0, %s137
      %s155 = sphi 0, %s155
      %s157 = sphi 0, %s155
      %s158 = sphi 0, %s157
      %s172 = sphi 0, %s158
      %s178 = sphi 0, %s180
      %s181 = sphi 0, %s178
      %s182 = sphi 0, %s181
      %s198 = sphi 0, %s182
    $region4: #{tpu_custom_call.1} parent=1 // loop_header_branch
      %19 = sbr.rel (%p17) target = $region8
    $region5: #{tpu_custom_call.1} parent=1 // loop_body
      %s21 = ssub.s32 %s16, 1
      %s22 = ssub.s32 %s16, 2
      %s32 = sadd.s32 1, %s25
      %p33 = scmp.ge.s32.totalorder %s32, 1
      %s34 = scalar_select %p33, 0, %s32
      %s35 = sadd.s32 1, %s24
      %s36 = scalar_select %p33, %s35, %s24
      %p37 = scmp.ge.s32.totalorder %s36, 1
      %s38 = scalar_select %p37, 0, %s36
      %s39 = sadd.s32 1, %s23
      %s40 = scalar_select %p37, %s39, %s23
      %p41 = scmp.ge.s32.totalorder %s40, 2
      %s42 = scalar_select %p41, 0, %s40
      %s43 = ssub.s32 %s24, %s38
      %s44 = ssub.s32 %s25, %s34
      %s45 = sor.u32 %s43, %s44
      %p46 = scmp.eq.s32.totalorder %s45, 0
      %s48 = sadd.s32 %s47, 1
      %s49 = scalar_select %p46, %s47, %s48
      %p52 = pneg %p46
      %p53 = scmp.eq.s32.totalorder %s16, 1
      %p54 = por %p52, %p53
      %p55 = scmp.ne.s32.totalorder %s47, %s50
      %p56 = scmp.eq.s32.totalorder %s16, 0
      %p57 = por %p55, %p56
      %p58 = scmp.ne.s32.totalorder %s47, %s50
      %p59 = scmp.eq.s32.totalorder %s21, 1
      %p60 = por %p58, %p59
      %p61 = scmp.ne.s32.totalorder %s50, %s51
      %p62 = scmp.eq.s32.totalorder %s21, 0
      %p63 = por %p61, %p62
      %p64 = scmp.ne.s32.totalorder %s50, %s51
      %p65 = scmp.eq.s32.totalorder %s22, 1
      %p66 = por %p64, %p65
      %p68 = scmp.ne.s32.totalorder %s51, %s67
      %p69 = scmp.eq.s32.totalorder %s22, 0
      %p70 = por %p68, %p69
      %s72 = sadd.s32 %s71, 1
      %p75 = scmp.eq.s32.totalorder %s16, 1
      %p76 = scmp.ne.s32.totalorder %s71, %s73
      %p77 = scmp.eq.s32.totalorder %s16, 0
      %p78 = por %p76, %p77
      %p79 = scmp.ne.s32.totalorder %s71, %s73
      %p80 = scmp.eq.s32.totalorder %s21, 1
      %p81 = por %p79, %p80
      %p82 = scmp.ne.s32.totalorder %s73, %s74
      %p83 = scmp.eq.s32.totalorder %s21, 0
      %p84 = por %p82, %p83
      %p85 = scmp.ne.s32.totalorder %s73, %s74
      %p86 = scmp.eq.s32.totalorder %s22, 1
      %p87 = por %p85, %p86
      %p89 = scmp.ne.s32.totalorder %s74, %s88
      %p90 = scmp.eq.s32.totalorder %s22, 0
      %p91 = por %p89, %p90
      %s93 = sadd.s32 %s92, 1
      %p96 = scmp.eq.s32.totalorder %s16, 1
      %p97 = scmp.ne.s32.totalorder %s92, %s94
      %p98 = scmp.eq.s32.totalorder %s16, 0
      %p99 = por %p97, %p98
      %p100 = scmp.ne.s32.totalorder %s92, %s94
      %p101 = scmp.eq.s32.totalorder %s21, 1
      %p102 = por %p100, %p101
      %p103 = scmp.ne.s32.totalorder %s94, %s95
      %p104 = scmp.eq.s32.totalorder %s21, 0
      %p105 = por %p103, %p104
      %p106 = scmp.ne.s32.totalorder %s94, %s95
      %p107 = scmp.eq.s32.totalorder %s22, 1
      %p108 = por %p106, %p107
      %p110 = scmp.ne.s32.totalorder %s95, %s109
      %p111 = scmp.eq.s32.totalorder %s22, 0
      %p112 = por %p110, %p111
      %s114 = sadd.s32 %s113, 1
      %p117 = scmp.eq.s32.totalorder %s16, 1
      %p118 = scmp.ne.s32.totalorder %s113, %s115
      %p119 = scmp.eq.s32.totalorder %s16, 0
      %p120 = por %p118, %p119
      %p121 = scmp.ne.s32.totalorder %s113, %s115
      %p122 = scmp.eq.s32.totalorder %s21, 1
      %p123 = por %p121, %p122
      %p124 = scmp.ne.s32.totalorder %s115, %s116
      %p125 = scmp.eq.s32.totalorder %s21, 0
      %p126 = por %p124, %p125
      %p127 = scmp.ne.s32.totalorder %s115, %s116
      %p128 = scmp.eq.s32.totalorder %s22, 1
      %p129 = por %p127, %p128
      %p131 = scmp.ne.s32.totalorder %s116, %s130
      %p132 = scmp.eq.s32.totalorder %s22, 0
      %p133 = por %p131, %p132
      %s135 = sadd.s32 %s134, 1
      %p138 = scmp.eq.s32.totalorder %s16, 1
      %p139 = scmp.ne.s32.totalorder %s134, %s136
      %p140 = scmp.eq.s32.totalorder %s16, 0
      %p141 = por %p139, %p140
      %p142 = scmp.ne.s32.totalorder %s134, %s136
      %p143 = scmp.eq.s32.totalorder %s21, 1
      %p144 = por %p142, %p143
      %p145 = scmp.ne.s32.totalorder %s136, %s137
      %p146 = scmp.eq.s32.totalorder %s21, 0
      %p147 = por %p145, %p146
      %p148 = scmp.ne.s32.totalorder %s136, %s137
      %p149 = scmp.eq.s32.totalorder %s22, 1
      %p150 = por %p148, %p149
      %p152 = scmp.ne.s32.totalorder %s137, %s151
      %p153 = scmp.eq.s32.totalorder %s22, 0
      %p154 = por %p152, %p153
      %s156 = sadd.s32 %s155, 1
      %p159 = scmp.eq.s32.totalorder %s16, 1
      %p160 = scmp.ne.s32.totalorder %s155, %s157
      %p161 = scmp.eq.s32.totalorder %s16, 0
      %p162 = por %p160, %p161
      %p163 = scmp.ne.s32.totalorder %s155, %s157
      %p164 = scmp.eq.s32.totalorder %s21, 1
      %p165 = por %p163, %p164
      %p166 = scmp.ne.s32.totalorder %s157, %s158
      %p167 = scmp.eq.s32.totalorder %s21, 0
      %p168 = por %p166, %p167
      %p169 = scmp.ne.s32.totalorder %s157, %s158
      %p170 = scmp.eq.s32.totalorder %s22, 1
      %p171 = por %p169, %p170
      %p173 = scmp.ne.s32.totalorder %s158, %s172
      %p174 = scmp.eq.s32.totalorder %s22, 0
      %p175 = por %p173, %p174
      %s176 = ssub.s32 %s24, %s38
      %p177 = scmp.eq.s32.totalorder %s176, 0
      %s179 = sadd.s32 %s178, 1
      %s180 = scalar_select %p177, %s178, %s179
      %p183 = pneg %p177
      %p184 = scmp.eq.s32.totalorder %s16, 1
      %p185 = por %p183, %p184
      %p186 = scmp.ne.s32.totalorder %s178, %s181
      %p187 = scmp.eq.s32.totalorder %s16, 0
      %p188 = por %p186, %p187
      %p189 = scmp.ne.s32.totalorder %s178, %s181
      %p190 = scmp.eq.s32.totalorder %s21, 1
      %p191 = por %p189, %p190
      %p192 = scmp.ne.s32.totalorder %s181, %s182
      %p193 = scmp.eq.s32.totalorder %s21, 0
      %p194 = por %p192, %p193
      %p195 = scmp.ne.s32.totalorder %s181, %s182
      %p196 = scmp.eq.s32.totalorder %s22, 1
      %p197 = por %p195, %p196
      %p199 = scmp.ne.s32.totalorder %s182, %s198
      %p200 = scmp.eq.s32.totalorder %s22, 0
      %p201 = por %p199, %p200
      %p202 = scmp.le.s32.totalorder 1, %s16
      %p203 = scmp.lt.s32.totalorder %s16, 3
      %p204 = pnand %p202, %p203
      %p205 = pneg %p204
      // Predicated region
      $region9: #{tpu_custom_call.1} parent=5 // pred_check
        _
      $region10: #{tpu_custom_call.1} parent=5 // pred_check_branch
        %207 = sbr.rel (%p204) target = $region12
      $region11: #{tpu_custom_call.1} parent=5 // pred_region
        %s208 = ssub.s32 %s16, 1
        // Predicated region
        $region13: #{tpu_custom_call.1} parent=11 // pred_check
          %p209 = pneg %p63
        $region14: #{tpu_custom_call.1} parent=11 // pred_check_branch
          %211 = sbr.rel (%p209) target = $region16
        $region15: #{tpu_custom_call.1} parent=11 // pred_region
          %s212 = smul.u32 16, %s27
          %s214 = ssub.s32 2048, 2048
          %215 = vsyncadd [#allocation6], %s214
          %s216 = sadd.s32 %s28, %s212
          %s217 = smul.addr %s216, 128
          %s218 = scalar_lea.hbm %s0, %s217
          %s219 = sshll.u32 [#allocation5], 4
          %s220 = int_to_ptr.vmem [resolvable:$true] %s219
          %225 = dma.hbm_to_vmem [thread:$0]  %s218, 2048, %s220, [#allocation6], 128, 128, 8
        $region16: #{tpu_custom_call.1} parent=11 // pred_fallthru
          _
        // Predicated region
        $region17: #{tpu_custom_call.1} parent=11 // pred_check
          %p226 = pneg %p84
        $region18: #{tpu_custom_call.1} parent=11 // pred_check_branch
          %228 = sbr.rel (%p226) target = $region20
        $region19: #{tpu_custom_call.1} parent=11 // pred_region
          %s230 = ssub.s32 2048, 2048
          %231 = vsyncadd [#allocation9], %s230
          %s232 = sshll.u32 [#allocation8], 4
          %s233 = int_to_ptr.vmem [resolvable:$true] %s232
          %238 = dma.hbm_to_vmem [thread:$0]  %s1, 2048, %s233, [#allocation9], 128, 128, 8
        $region20: #{tpu_custom_call.1} parent=11 // pred_fallthru
          _
        // Predicated region
        $region21: #{tpu_custom_call.1} parent=11 // pred_check
          %p239 = pneg %p105
        $region22: #{tpu_custom_call.1} parent=11 // pred_check_branch
          %241 = sbr.rel (%p239) target = $region24
        $region23: #{tpu_custom_call.1} parent=11 // pred_region
          %s243 = ssub.s32 2048, 2048
          %244 = vsyncadd [#allocation9], %s243
          %s245 = sshll.u32 [#allocation10], 4
          %s246 = int_to_ptr.vmem [resolvable:$true] %s245
          %251 = dma.hbm_to_vmem [thread:$0]  %s2, 2048, %s246, [#allocation9], 128, 128, 8
        $region24: #{tpu_custom_call.1} parent=11 // pred_fallthru
          _
        // Predicated region
        $region25: #{tpu_custom_call.1} parent=11 // pred_check
          %p252 = pneg %p126
        $region26: #{tpu_custom_call.1} parent=11 // pred_check_branch
          %254 = sbr.rel (%p252) target = $region28
        $region27: #{tpu_custom_call.1} parent=11 // pred_region
          _
        $region28: #{tpu_custom_call.1} parent=11 // pred_fallthru
          _
        // Predicated region
        $region29: #{tpu_custom_call.1} parent=11 // pred_check
          %p255 = pneg %p147
        $region30: #{tpu_custom_call.1} parent=11 // pred_check_branch
          %257 = sbr.rel (%p255) target = $region32
        $region31: #{tpu_custom_call.1} parent=11 // pred_region
          %s259 = ssub.s32 2048, 2048
          %260 = vsyncadd [#allocation12], %s259
          %s261 = sshll.u32 [#allocation11], 4
          %s262 = int_to_ptr.vmem [resolvable:$true] %s261
          %267 = dma.hbm_to_vmem [thread:$0]  %s4, 2048, %s262, [#allocation12], 128, 128, 8
        $region32: #{tpu_custom_call.1} parent=11 // pred_fallthru
          _
        // Predicated region
        $region33: #{tpu_custom_call.1} parent=11 // pred_check
          %p268 = pneg %p168
        $region34: #{tpu_custom_call.1} parent=11 // pred_check_branch
          %270 = sbr.rel (%p268) target = $region36
        $region35: #{tpu_custom_call.1} parent=11 // pred_region
          _
        $region36: #{tpu_custom_call.1} parent=11 // pred_fallthru
          _
      $region12: #{tpu_custom_call.1} parent=5 // pred_fallthru
        _
      %p271 = scmp.lt.s32.totalorder %s16, 2
      // Predicated region
      $region37: #{tpu_custom_call.1} parent=5 // pred_check
        %p272 = pneg %p271
      $region38: #{tpu_custom_call.1} parent=5 // pred_check_branch
        %274 = sbr.rel (%p272) target = $region40
      $region39: #{tpu_custom_call.1} parent=5 // pred_region
        _
      $region40: #{tpu_custom_call.1} parent=5 // pred_fallthru
        _
      %p275 = scmp.le.s32.totalorder 1, %s16
      %p276 = scmp.lt.s32.totalorder %s16, 3
      %p277 = pnand %p275, %p276
      %p278 = pneg %p277
      // Predicated region
      $region41: #{tpu_custom_call.1} parent=5 // pred_check
        _
      $region42: #{tpu_custom_call.1} parent=5 // pred_check_branch
        %280 = sbr.rel (%p277) target = $region44
      $region43: #{tpu_custom_call.1} parent=5 // pred_region
        %s281 = ssub.s32 %s16, 1
        // Predicated region
        $region45: #{tpu_custom_call.1} parent=43 // pred_check
          %p282 = pneg %p63
        $region46: #{tpu_custom_call.1} parent=43 // pred_check_branch
          %284 = sbr.rel (%p282) target = $region48
        $region47: #{tpu_custom_call.1} parent=43 // pred_region
          %285 = dma.done [#allocation6], 2048
        $region48: #{tpu_custom_call.1} parent=43 // pred_fallthru
          _
        // Predicated region
        $region49: #{tpu_custom_call.1} parent=43 // pred_check
          %p286 = pneg %p84
        $region50: #{tpu_custom_call.1} parent=43 // pred_check_branch
          %288 = sbr.rel (%p286) target = $region52
        $region51: #{tpu_custom_call.1} parent=43 // pred_region
          %289 = dma.done [#allocation9], 2048
        $region52: #{tpu_custom_call.1} parent=43 // pred_fallthru
          _
        // Predicated region
        $region53: #{tpu_custom_call.1} parent=43 // pred_check
          %p290 = pneg %p105
        $region54: #{tpu_custom_call.1} parent=43 // pred_check_branch
          %292 = sbr.rel (%p290) target = $region56
        $region55: #{tpu_custom_call.1} parent=43 // pred_region
          %293 = dma.done [#allocation9], 2048
        $region56: #{tpu_custom_call.1} parent=43 // pred_fallthru
          _
        // Predicated region
        $region57: #{tpu_custom_call.1} parent=43 // pred_check
          %p294 = pneg %p147
        $region58: #{tpu_custom_call.1} parent=43 // pred_check_branch
          %296 = sbr.rel (%p294) target = $region60
        $region59: #{tpu_custom_call.1} parent=43 // pred_region
          %297 = dma.done [#allocation12], 2048
        $region60: #{tpu_custom_call.1} parent=43 // pred_fallthru
          _
        %p298 = pneg %p63
        %p299 = pneg %p60
        %p300 = pneg %p84
        %p301 = pneg %p81
        %p302 = pneg %p105
        %p303 = pneg %p102
        %p304 = pneg %p126
        %p305 = pneg %p123
        %p306 = pneg %p147
        %p307 = pneg %p144
        %p308 = pneg %p168
        %p309 = pneg %p165
        %p310 = pneg %p194
        %p311 = pneg %p191
        %s312 = smul.u32 16, %s27
        %s313 = smul.u32 16, %s27
        %p314 = scmp.eq.s32.totalorder %s27, 0
        %p315 = scmp.eq.s32.totalorder %s28, 0
        %p316 = pnand %p314, %p315
        %p317 = pneg %p316
        %p318 = scmp.eq.s32.totalorder %s26, 0
        %p319 = pnand %p317, %p318
        %p320 = pneg %p319
        // Predicated region
        $region61: #{tpu_custom_call.1} parent=43 // pred_check
          _
        $region62: #{tpu_custom_call.1} parent=43 // pred_check_branch
          %322 = sbr.rel (%p319) target = $region64
        $region63: #{tpu_custom_call.1} parent=43 // pred_region
          %v323 = vld [vmem:[#allocation8] sm:$0xff]
          %v324 = vld [vmem:[#allocation8 + $0x8] sm:$0xff]
          %v325 = vld [vmem:[#allocation8 + $0x10] sm:$0xff]
          %v326 = vld [vmem:[#allocation8 + $0x18] sm:$0xff]
          %v327 = vld [vmem:[#allocation8 + $0x20] sm:$0xff]
          %v328 = vld [vmem:[#allocation8 + $0x28] sm:$0xff]
          %v329 = vld [vmem:[#allocation8 + $0x30] sm:$0xff]
          %v330 = vld [vmem:[#allocation8 + $0x38] sm:$0xff]
          %v331 = vld [vmem:[#allocation8 + $0x40] sm:$0xff]
          %v332 = vld [vmem:[#allocation8 + $0x48] sm:$0xff]
          %v333 = vld [vmem:[#allocation8 + $0x50] sm:$0xff]
          %v334 = vld [vmem:[#allocation8 + $0x58] sm:$0xff]
          %v335 = vld [vmem:[#allocation8 + $0x60] sm:$0xff]
          %v336 = vld [vmem:[#allocation8 + $0x68] sm:$0xff]
          %v337 = vld [vmem:[#allocation8 + $0x70] sm:$0xff]
          %v338 = vld [vmem:[#allocation8 + $0x78] sm:$0xff]
          %v339 = vld [vmem:[#allocation10] sm:$0xff]
          %v340 = vld [vmem:[#allocation10 + $0x8] sm:$0xff]
          %v341 = vld [vmem:[#allocation10 + $0x10] sm:$0xff]
          %v342 = vld [vmem:[#allocation10 + $0x18] sm:$0xff]
          %v343 = vld [vmem:[#allocation10 + $0x20] sm:$0xff]
          %v344 = vld [vmem:[#allocation10 + $0x28] sm:$0xff]
          %v345 = vld [vmem:[#allocation10 + $0x30] sm:$0xff]
          %v346 = vld [vmem:[#allocation10 + $0x38] sm:$0xff]
          %v347 = vld [vmem:[#allocation10 + $0x40] sm:$0xff]
          %v348 = vld [vmem:[#allocation10 + $0x48] sm:$0xff]
          %v349 = vld [vmem:[#allocation10 + $0x50] sm:$0xff]
          %v350 = vld [vmem:[#allocation10 + $0x58] sm:$0xff]
          %v351 = vld [vmem:[#allocation10 + $0x60] sm:$0xff]
          %v352 = vld [vmem:[#allocation10 + $0x68] sm:$0xff]
          %v353 = vld [vmem:[#allocation10 + $0x70] sm:$0xff]
          %v354 = vld [vmem:[#allocation10 + $0x78] sm:$0xff]
          %355 = vmatprep.subr.mxu0 0.0
          %356 = vmatpush1.msra.mxu0 %v354
          %357 = vmatprep.subr.mxu0 0.0
          %358 = vmatpush1.msra.mxu0 %v353
          %359 = vmatprep.subr.mxu0 0.0
          %360 = vmatpush1.msra.mxu0 %v352
          %361 = vmatprep.subr.mxu0 0.0
          %362 = vmatpush1.msra.mxu0 %v351
          %363 = vmatprep.subr.mxu0 0.0
          %364 = vmatpush1.msra.mxu0 %v350
          %365 = vmatprep.subr.mxu0 0.0
          %366 = vmatpush1.msra.mxu0 %v349
          %367 = vmatprep.subr.mxu0 0.0
          %368 = vmatpush1.msra.mxu0 %v348
          %369 = vmatprep.subr.mxu0 0.0
          %370 = vmatpush1.msra.mxu0 %v347
          %371 = vmatprep.subr.mxu0 0.0
          %372 = vmatpush1.msra.mxu0 %v346
          %373 = vmatprep.subr.mxu0 0.0
          %374 = vmatpush1.msra.mxu0 %v345
          %375 = vmatprep.subr.mxu0 0.0
          %376 = vmatpush1.msra.mxu0 %v344
          %377 = vmatprep.subr.mxu0 0.0
          %378 = vmatpush1.msra.mxu0 %v343
          %379 = vmatprep.subr.mxu0 0.0
          %380 = vmatpush1.msra.mxu0 %v342
          %381 = vmatprep.subr.mxu0 0.0
          %382 = vmatpush1.msra.mxu0 %v341
          %383 = vmatprep.subr.mxu0 0.0
          %384 = vmatpush1.msra.mxu0 %v340
          %385 = vmatprep.subr.mxu0 0.0
          %386 = vmatpush1.msra.mxu0 %v339
          %387 = vmatprep.subr.mxu0 0.0
          %388 = vmatpush2.msra.mxu0 0.0
          %389 = vmatprep.subr.mxu0 0.0
          %390 = vmatpush2.msra.mxu0 0.0
          %391 = vmatprep.subr.mxu0 0.0
          %392 = vmatpush2.msra.mxu0 0.0
          %393 = vmatprep.subr.mxu0 0.0
          %394 = vmatpush2.msra.mxu0 0.0
          %395 = vmatprep.subr.mxu0 0.0
          %396 = vmatpush2.msra.mxu0 0.0
          %397 = vmatprep.subr.mxu0 0.0
          %398 = vmatpush2.msra.mxu0 0.0
          %399 = vmatprep.subr.mxu0 0.0
          %400 = vmatpush2.msra.mxu0 0.0
          %401 = vmatprep.subr.mxu0 0.0
          %402 = vmatpush2.msra.mxu0 0.0
          %403 = vmatprep.subr.mxu0 0.0
          %404 = vmatpush2.msra.mxu0 0.0
          %405 = vmatprep.subr.mxu0 0.0
          %406 = vmatpush2.msra.mxu0 0.0
          %407 = vmatprep.subr.mxu0 0.0
          %408 = vmatpush2.msra.mxu0 0.0
          %409 = vmatprep.subr.mxu0 0.0
          %410 = vmatpush2.msra.mxu0 0.0
          %411 = vmatprep.subr.mxu0 0.0
          %412 = vmatpush2.msra.mxu0 0.0
          %413 = vmatprep.subr.mxu0 0.0
          %414 = vmatpush2.msra.mxu0 0.0
          %415 = vmatprep.subr.mxu0 0.0
          %416 = vmatpush2.msra.mxu0 0.0
          %417 = vmatprep.subr.mxu0 0.0
          %418 = vmatpush2.msra.mxu0 0.0
          %419 = vmatprep.mubr.f32.mxu0 0.0
          %420 = vmatmul.mubr.f32.gmra.mxu0 %v323
          %v421 = vpop.f32.mrf.mxu0
          %v422 = vadd.f32 0.0, %v421
          %v423 = vpop.f32.mrf.mxu0
          %424 = vmatprep.mubr.f32.mxu0 0.0
          %425 = vmatmul.mubr.f32.gmra.mxu0 %v324
          %v426 = vpop.f32.mrf.mxu0
          %v427 = vadd.f32 0.0, %v426
          %v428 = vpop.f32.mrf.mxu0
          %429 = vmatprep.mubr.f32.mxu0 0.0
          %430 = vmatmul.mubr.f32.gmra.mxu0 %v325
          %v431 = vpop.f32.mrf.mxu0
          %v432 = vadd.f32 0.0, %v431
          %v433 = vpop.f32.mrf.mxu0
          %434 = vmatprep.mubr.f32.mxu0 0.0
          %435 = vmatmul.mubr.f32.gmra.mxu0 %v326
          %v436 = vpop.f32.mrf.mxu0
          %v437 = vadd.f32 0.0, %v436
          %v438 = vpop.f32.mrf.mxu0
          %439 = vmatprep.mubr.f32.mxu0 0.0
          %440 = vmatmul.mubr.f32.gmra.mxu0 %v327
          %v441 = vpop.f32.mrf.mxu0
          %v442 = vadd.f32 0.0, %v441
          %v443 = vpop.f32.mrf.mxu0
          %444 = vmatprep.mubr.f32.mxu0 0.0
          %445 = vmatmul.mubr.f32.gmra.mxu0 %v328
          %v446 = vpop.f32.mrf.mxu0
          %v447 = vadd.f32 0.0, %v446
          %v448 = vpop.f32.mrf.mxu0
          %449 = vmatprep.mubr.f32.mxu0 0.0
          %450 = vmatmul.mubr.f32.gmra.mxu0 %v329
          %v451 = vpop.f32.mrf.mxu0
          %v452 = vadd.f32 0.0, %v451
          %v453 = vpop.f32.mrf.mxu0
          %454 = vmatprep.mubr.f32.mxu0 0.0
          %455 = vmatmul.mubr.f32.gmra.mxu0 %v330
          %v456 = vpop.f32.mrf.mxu0
          %v457 = vadd.f32 0.0, %v456
          %v458 = vpop.f32.mrf.mxu0
          %459 = vmatprep.mubr.f32.mxu0 0.0
          %460 = vmatmul.mubr.f32.gmra.mxu0 %v331
          %v461 = vpop.f32.mrf.mxu0
          %v462 = vadd.f32 0.0, %v461
          %v463 = vpop.f32.mrf.mxu0
          %464 = vmatprep.mubr.f32.mxu0 0.0
          %465 = vmatmul.mubr.f32.gmra.mxu0 %v332
          %v466 = vpop.f32.mrf.mxu0
          %v467 = vadd.f32 0.0, %v466
          %v468 = vpop.f32.mrf.mxu0
          %469 = vmatprep.mubr.f32.mxu0 0.0
          %470 = vmatmul.mubr.f32.gmra.mxu0 %v333
          %v471 = vpop.f32.mrf.mxu0
          %v472 = vadd.f32 0.0, %v471
          %v473 = vpop.f32.mrf.mxu0
          %474 = vmatprep.mubr.f32.mxu0 0.0
          %475 = vmatmul.mubr.f32.gmra.mxu0 %v334
          %v476 = vpop.f32.mrf.mxu0
          %v477 = vadd.f32 0.0, %v476
          %v478 = vpop.f32.mrf.mxu0
          %479 = vmatprep.mubr.f32.mxu0 0.0
          %480 = vmatmul.mubr.f32.gmra.mxu0 %v335
          %v481 = vpop.f32.mrf.mxu0
          %v482 = vadd.f32 0.0, %v481
          %v483 = vpop.f32.mrf.mxu0
          %484 = vmatprep.mubr.f32.mxu0 0.0
          %485 = vmatmul.mubr.f32.gmra.mxu0 %v336
          %v486 = vpop.f32.mrf.mxu0
          %v487 = vadd.f32 0.0, %v486
          %v488 = vpop.f32.mrf.mxu0
          %489 = vmatprep.mubr.f32.mxu0 0.0
          %490 = vmatmul.mubr.f32.gmra.mxu0 %v337
          %v491 = vpop.f32.mrf.mxu0
          %v492 = vadd.f32 0.0, %v491
          %v493 = vpop.f32.mrf.mxu0
          %494 = vmatprep.mubr.f32.mxu0 0.0
          %495 = vmatmul.mubr.f32.gmra.mxu0 %v338
          %v496 = vpop.f32.mrf.mxu0
          %v497 = vadd.f32 0.0, %v496
          %v498 = vpop.f32.mrf.mxu0
          %499 = vdwg.mxu0
          %500 = vst [vmem:[#allocation2] sm:$0xff] %v422
          %501 = vst [vmem:[#allocation2 + $0x8] sm:$0xff] %v427
          %502 = vst [vmem:[#allocation2 + $0x10] sm:$0xff] %v432
          %503 = vst [vmem:[#allocation2 + $0x18] sm:$0xff] %v437
          %504 = vst [vmem:[#allocation2 + $0x20] sm:$0xff] %v442
          %505 = vst [vmem:[#allocation2 + $0x28] sm:$0xff] %v447
          %506 = vst [vmem:[#allocation2 + $0x30] sm:$0xff] %v452
          %507 = vst [vmem:[#allocation2 + $0x38] sm:$0xff] %v457
          %508 = vst [vmem:[#allocation2 + $0x40] sm:$0xff] %v462
          %509 = vst [vmem:[#allocation2 + $0x48] sm:$0xff] %v467
          %510 = vst [vmem:[#allocation2 + $0x50] sm:$0xff] %v472
          %511 = vst [vmem:[#allocation2 + $0x58] sm:$0xff] %v477
          %512 = vst [vmem:[#allocation2 + $0x60] sm:$0xff] %v482
          %513 = vst [vmem:[#allocation2 + $0x68] sm:$0xff] %v487
          %514 = vst [vmem:[#allocation2 + $0x70] sm:$0xff] %v492
          %515 = vst [vmem:[#allocation2 + $0x78] sm:$0xff] %v497
        $region64: #{tpu_custom_call.1} parent=43 // pred_fallthru
          _
        %p516 = scmp.eq.s32.totalorder %s26, 1
        %p517 = pnand %p317, %p516
        %p518 = pneg %p517
        // Predicated region
        $region65: #{tpu_custom_call.1} parent=43 // pred_check
          _
        $region66: #{tpu_custom_call.1} parent=43 // pred_check_branch
          %520 = sbr.rel (%p517) target = $region68
        $region67: #{tpu_custom_call.1} parent=43 // pred_region
          %v521 = vld [vmem:[#allocation3] sm:$0xff]
          %v522 = vld [vmem:[#allocation3 + $0x8] sm:$0xff]
          %v523 = vld [vmem:[#allocation3 + $0x10] sm:$0xff]
          %v524 = vld [vmem:[#allocation3 + $0x18] sm:$0xff]
          %v525 = vld [vmem:[#allocation3 + $0x20] sm:$0xff]
          %v526 = vld [vmem:[#allocation3 + $0x28] sm:$0xff]
          %v527 = vld [vmem:[#allocation3 + $0x30] sm:$0xff]
          %v528 = vld [vmem:[#allocation3 + $0x38] sm:$0xff]
          %v529 = vld [vmem:[#allocation3 + $0x40] sm:$0xff]
          %v530 = vld [vmem:[#allocation3 + $0x48] sm:$0xff]
          %v531 = vld [vmem:[#allocation3 + $0x50] sm:$0xff]
          %v532 = vld [vmem:[#allocation3 + $0x58] sm:$0xff]
          %v533 = vld [vmem:[#allocation3 + $0x60] sm:$0xff]
          %v534 = vld [vmem:[#allocation3 + $0x68] sm:$0xff]
          %v535 = vld [vmem:[#allocation3 + $0x70] sm:$0xff]
          %v536 = vld [vmem:[#allocation3 + $0x78] sm:$0xff]
          %v537 = vld [vmem:[#allocation11] sm:$0xff]
          %v538 = vld [vmem:[#allocation11 + $0x8] sm:$0xff]
          %v539 = vld [vmem:[#allocation11 + $0x10] sm:$0xff]
          %v540 = vld [vmem:[#allocation11 + $0x18] sm:$0xff]
          %v541 = vld [vmem:[#allocation11 + $0x20] sm:$0xff]
          %v542 = vld [vmem:[#allocation11 + $0x28] sm:$0xff]
          %v543 = vld [vmem:[#allocation11 + $0x30] sm:$0xff]
          %v544 = vld [vmem:[#allocation11 + $0x38] sm:$0xff]
          %v545 = vld [vmem:[#allocation11 + $0x40] sm:$0xff]
          %v546 = vld [vmem:[#allocation11 + $0x48] sm:$0xff]
          %v547 = vld [vmem:[#allocation11 + $0x50] sm:$0xff]
          %v548 = vld [vmem:[#allocation11 + $0x58] sm:$0xff]
          %v549 = vld [vmem:[#allocation11 + $0x60] sm:$0xff]
          %v550 = vld [vmem:[#allocation11 + $0x68] sm:$0xff]
          %v551 = vld [vmem:[#allocation11 + $0x70] sm:$0xff]
          %v552 = vld [vmem:[#allocation11 + $0x78] sm:$0xff]
          %553 = vmatprep.subr.mxu0 0.0
          %554 = vmatpush1.msra.mxu0 %v552
          %555 = vmatprep.subr.mxu0 0.0
          %556 = vmatpush1.msra.mxu0 %v551
          %557 = vmatprep.subr.mxu0 0.0
          %558 = vmatpush1.msra.mxu0 %v550
          %559 = vmatprep.subr.mxu0 0.0
          %560 = vmatpush1.msra.mxu0 %v549
          %561 = vmatprep.subr.mxu0 0.0
          %562 = vmatpush1.msra.mxu0 %v548
          %563 = vmatprep.subr.mxu0 0.0
          %564 = vmatpush1.msra.mxu0 %v547
          %565 = vmatprep.subr.mxu0 0.0
          %566 = vmatpush1.msra.mxu0 %v546
          %567 = vmatprep.subr.mxu0 0.0
          %568 = vmatpush1.msra.mxu0 %v545
          %569 = vmatprep.subr.mxu0 0.0
          %570 = vmatpush1.msra.mxu0 %v544
          %571 = vmatprep.subr.mxu0 0.0
          %572 = vmatpush1.msra.mxu0 %v543
          %573 = vmatprep.subr.mxu0 0.0
          %574 = vmatpush1.msra.mxu0 %v542
          %575 = vmatprep.subr.mxu0 0.0
          %576 = vmatpush1.msra.mxu0 %v541
          %577 = vmatprep.subr.mxu0 0.0
          %578 = vmatpush1.msra.mxu0 %v540
          %579 = vmatprep.subr.mxu0 0.0
          %580 = vmatpush1.msra.mxu0 %v539
          %581 = vmatprep.subr.mxu0 0.0
          %582 = vmatpush1.msra.mxu0 %v538
          %583 = vmatprep.subr.mxu0 0.0
          %584 = vmatpush1.msra.mxu0 %v537
          %585 = vmatprep.subr.mxu0 0.0
          %586 = vmatpush2.msra.mxu0 0.0
          %587 = vmatprep.subr.mxu0 0.0
          %588 = vmatpush2.msra.mxu0 0.0
          %589 = vmatprep.subr.mxu0 0.0
          %590 = vmatpush2.msra.mxu0 0.0
          %591 = vmatprep.subr.mxu0 0.0
          %592 = vmatpush2.msra.mxu0 0.0
          %593 = vmatprep.subr.mxu0 0.0
          %594 = vmatpush2.msra.mxu0 0.0
          %595 = vmatprep.subr.mxu0 0.0
          %596 = vmatpush2.msra.mxu0 0.0
          %597 = vmatprep.subr.mxu0 0.0
          %598 = vmatpush2.msra.mxu0 0.0
          %599 = vmatprep.subr.mxu0 0.0
          %600 = vmatpush2.msra.mxu0 0.0
          %601 = vmatprep.subr.mxu0 0.0
          %602 = vmatpush2.msra.mxu0 0.0
          %603 = vmatprep.subr.mxu0 0.0
          %604 = vmatpush2.msra.mxu0 0.0
          %605 = vmatprep.subr.mxu0 0.0
          %606 = vmatpush2.msra.mxu0 0.0
          %607 = vmatprep.subr.mxu0 0.0
          %608 = vmatpush2.msra.mxu0 0.0
          %609 = vmatprep.subr.mxu0 0.0
          %610 = vmatpush2.msra.mxu0 0.0
          %611 = vmatprep.subr.mxu0 0.0
          %612 = vmatpush2.msra.mxu0 0.0
          %613 = vmatprep.subr.mxu0 0.0
          %614 = vmatpush2.msra.mxu0 0.0
          %615 = vmatprep.subr.mxu0 0.0
          %616 = vmatpush2.msra.mxu0 0.0
          %617 = vmatprep.mubr.f32.mxu0 0.0
          %618 = vmatmul.mubr.f32.gmra.mxu0 %v521
          %v619 = vpop.f32.mrf.mxu0
          %v620 = vadd.f32 0.0, %v619
          %v621 = vpop.f32.mrf.mxu0
          %622 = vmatprep.mubr.f32.mxu0 0.0
          %623 = vmatmul.mubr.f32.gmra.mxu0 %v522
          %v624 = vpop.f32.mrf.mxu0
          %v625 = vadd.f32 0.0, %v624
          %v626 = vpop.f32.mrf.mxu0
          %627 = vmatprep.mubr.f32.mxu0 0.0
          %628 = vmatmul.mubr.f32.gmra.mxu0 %v523
          %v629 = vpop.f32.mrf.mxu0
          %v630 = vadd.f32 0.0, %v629
          %v631 = vpop.f32.mrf.mxu0
          %632 = vmatprep.mubr.f32.mxu0 0.0
          %633 = vmatmul.mubr.f32.gmra.mxu0 %v524
          %v634 = vpop.f32.mrf.mxu0
          %v635 = vadd.f32 0.0, %v634
          %v636 = vpop.f32.mrf.mxu0
          %637 = vmatprep.mubr.f32.mxu0 0.0
          %638 = vmatmul.mubr.f32.gmra.mxu0 %v525
          %v639 = vpop.f32.mrf.mxu0
          %v640 = vadd.f32 0.0, %v639
          %v641 = vpop.f32.mrf.mxu0
          %642 = vmatprep.mubr.f32.mxu0 0.0
          %643 = vmatmul.mubr.f32.gmra.mxu0 %v526
          %v644 = vpop.f32.mrf.mxu0
          %v645 = vadd.f32 0.0, %v644
          %v646 = vpop.f32.mrf.mxu0
          %647 = vmatprep.mubr.f32.mxu0 0.0
          %648 = vmatmul.mubr.f32.gmra.mxu0 %v527
          %v649 = vpop.f32.mrf.mxu0
          %v650 = vadd.f32 0.0, %v649
          %v651 = vpop.f32.mrf.mxu0
          %652 = vmatprep.mubr.f32.mxu0 0.0
          %653 = vmatmul.mubr.f32.gmra.mxu0 %v528
          %v654 = vpop.f32.mrf.mxu0
          %v655 = vadd.f32 0.0, %v654
          %v656 = vpop.f32.mrf.mxu0
          %657 = vmatprep.mubr.f32.mxu0 0.0
          %658 = vmatmul.mubr.f32.gmra.mxu0 %v529
          %v659 = vpop.f32.mrf.mxu0
          %v660 = vadd.f32 0.0, %v659
          %v661 = vpop.f32.mrf.mxu0
          %662 = vmatprep.mubr.f32.mxu0 0.0
          %663 = vmatmul.mubr.f32.gmra.mxu0 %v530
          %v664 = vpop.f32.mrf.mxu0
          %v665 = vadd.f32 0.0, %v664
          %v666 = vpop.f32.mrf.mxu0
          %667 = vmatprep.mubr.f32.mxu0 0.0
          %668 = vmatmul.mubr.f32.gmra.mxu0 %v531
          %v669 = vpop.f32.mrf.mxu0
          %v670 = vadd.f32 0.0, %v669
          %v671 = vpop.f32.mrf.mxu0
          %672 = vmatprep.mubr.f32.mxu0 0.0
          %673 = vmatmul.mubr.f32.gmra.mxu0 %v532
          %v674 = vpop.f32.mrf.mxu0
          %v675 = vadd.f32 0.0, %v674
          %v676 = vpop.f32.mrf.mxu0
          %677 = vmatprep.mubr.f32.mxu0 0.0
          %678 = vmatmul.mubr.f32.gmra.mxu0 %v533
          %v679 = vpop.f32.mrf.mxu0
          %v680 = vadd.f32 0.0, %v679
          %v681 = vpop.f32.mrf.mxu0
          %682 = vmatprep.mubr.f32.mxu0 0.0
          %683 = vmatmul.mubr.f32.gmra.mxu0 %v534
          %v684 = vpop.f32.mrf.mxu0
          %v685 = vadd.f32 0.0, %v684
          %v686 = vpop.f32.mrf.mxu0
          %687 = vmatprep.mubr.f32.mxu0 0.0
          %688 = vmatmul.mubr.f32.gmra.mxu0 %v535
          %v689 = vpop.f32.mrf.mxu0
          %v690 = vadd.f32 0.0, %v689
          %v691 = vpop.f32.mrf.mxu0
          %692 = vmatprep.mubr.f32.mxu0 0.0
          %693 = vmatmul.mubr.f32.gmra.mxu0 %v536
          %v694 = vpop.f32.mrf.mxu0
          %v695 = vadd.f32 0.0, %v694
          %v696 = vpop.f32.mrf.mxu0
          %697 = vdwg.mxu0
          %698 = vst [vmem:[#allocation2] sm:$0xff] %v620
          %699 = vst [vmem:[#allocation2 + $0x8] sm:$0xff] %v625
          %700 = vst [vmem:[#allocation2 + $0x10] sm:$0xff] %v630
          %701 = vst [vmem:[#allocation2 + $0x18] sm:$0xff] %v635
          %702 = vst [vmem:[#allocation2 + $0x20] sm:$0xff] %v640
          %703 = vst [vmem:[#allocation2 + $0x28] sm:$0xff] %v645
          %704 = vst [vmem:[#allocation2 + $0x30] sm:$0xff] %v650
          %705 = vst [vmem:[#allocation2 + $0x38] sm:$0xff] %v655
          %706 = vst [vmem:[#allocation2 + $0x40] sm:$0xff] %v660
          %707 = vst [vmem:[#allocation2 + $0x48] sm:$0xff] %v665
          %708 = vst [vmem:[#allocation2 + $0x50] sm:$0xff] %v670
          %709 = vst [vmem:[#allocation2 + $0x58] sm:$0xff] %v675
          %710 = vst [vmem:[#allocation2 + $0x60] sm:$0xff] %v680
          %711 = vst [vmem:[#allocation2 + $0x68] sm:$0xff] %v685
          %712 = vst [vmem:[#allocation2 + $0x70] sm:$0xff] %v690
          %713 = vst [vmem:[#allocation2 + $0x78] sm:$0xff] %v695
        $region68: #{tpu_custom_call.1} parent=43 // pred_fallthru
          _
        // Predicated region
        $region69: #{tpu_custom_call.1} parent=43 // pred_check
          %p714 = pneg %p315
        $region70: #{tpu_custom_call.1} parent=43 // pred_check_branch
          %716 = sbr.rel (%p714) target = $region72
        $region71: #{tpu_custom_call.1} parent=43 // pred_region
          %717 = vst [vmem:[#allocation4] sm:$0xff] 0.0
          %718 = vst [vmem:[#allocation4 + $0x8] sm:$0xff] 0.0
          %719 = vst [vmem:[#allocation4 + $0x10] sm:$0xff] 0.0
          %720 = vst [vmem:[#allocation4 + $0x18] sm:$0xff] 0.0
          %721 = vst [vmem:[#allocation4 + $0x20] sm:$0xff] 0.0
          %722 = vst [vmem:[#allocation4 + $0x28] sm:$0xff] 0.0
          %723 = vst [vmem:[#allocation4 + $0x30] sm:$0xff] 0.0
          %724 = vst [vmem:[#allocation4 + $0x38] sm:$0xff] 0.0
          %725 = vst [vmem:[#allocation4 + $0x40] sm:$0xff] 0.0
          %726 = vst [vmem:[#allocation4 + $0x48] sm:$0xff] 0.0
          %727 = vst [vmem:[#allocation4 + $0x50] sm:$0xff] 0.0
          %728 = vst [vmem:[#allocation4 + $0x58] sm:$0xff] 0.0
          %729 = vst [vmem:[#allocation4 + $0x60] sm:$0xff] 0.0
          %730 = vst [vmem:[#allocation4 + $0x68] sm:$0xff] 0.0
          %731 = vst [vmem:[#allocation4 + $0x70] sm:$0xff] 0.0
          %732 = vst [vmem:[#allocation4 + $0x78] sm:$0xff] 0.0
        $region72: #{tpu_custom_call.1} parent=43 // pred_fallthru
          _
        %s733 = smul.u32 %s28, 128
        %v734 = vld [vmem:[#allocation4] sm:$0xff]
        %v735 = vld [vmem:[#allocation4 + $0x8] sm:$0xff]
        %v736 = vld [vmem:[#allocation4 + $0x10] sm:$0xff]
        %v737 = vld [vmem:[#allocation4 + $0x18] sm:$0xff]
        %v738 = vld [vmem:[#allocation4 + $0x20] sm:$0xff]
        %v739 = vld [vmem:[#allocation4 + $0x28] sm:$0xff]
        %v740 = vld [vmem:[#allocation4 + $0x30] sm:$0xff]
        %v741 = vld [vmem:[#allocation4 + $0x38] sm:$0xff]
        %v742 = vld [vmem:[#allocation4 + $0x40] sm:$0xff]
        %v743 = vld [vmem:[#allocation4 + $0x48] sm:$0xff]
        %v744 = vld [vmem:[#allocation4 + $0x50] sm:$0xff]
        %v745 = vld [vmem:[#allocation4 + $0x58] sm:$0xff]
        %v746 = vld [vmem:[#allocation4 + $0x60] sm:$0xff]
        %v747 = vld [vmem:[#allocation4 + $0x68] sm:$0xff]
        %v748 = vld [vmem:[#allocation4 + $0x70] sm:$0xff]
        %v749 = vld [vmem:[#allocation4 + $0x78] sm:$0xff]
        %v750 = vld [vmem:[#allocation5] sm:$0xff]
        %v751 = vld [vmem:[#allocation5 + $0x8] sm:$0xff]
        %v752 = vld [vmem:[#allocation5 + $0x10] sm:$0xff]
        %v753 = vld [vmem:[#allocation5 + $0x18] sm:$0xff]
        %v754 = vld [vmem:[#allocation5 + $0x20] sm:$0xff]
        %v755 = vld [vmem:[#allocation5 + $0x28] sm:$0xff]
        %v756 = vld [vmem:[#allocation5 + $0x30] sm:$0xff]
        %v757 = vld [vmem:[#allocation5 + $0x38] sm:$0xff]
        %v758 = vld [vmem:[#allocation5 + $0x40] sm:$0xff]
        %v759 = vld [vmem:[#allocation5 + $0x48] sm:$0xff]
        %v760 = vld [vmem:[#allocation5 + $0x50] sm:$0xff]
        %v761 = vld [vmem:[#allocation5 + $0x58] sm:$0xff]
        %v762 = vld [vmem:[#allocation5 + $0x60] sm:$0xff]
        %v763 = vld [vmem:[#allocation5 + $0x68] sm:$0xff]
        %v764 = vld [vmem:[#allocation5 + $0x70] sm:$0xff]
        %v765 = vld [vmem:[#allocation5 + $0x78] sm:$0xff]
        %s766 = scalar_lea.vmem [#allocation2], %s733
        %v767 = vld [vmem:[%s766] sm:$0xff]
        %v768 = vld [vmem:[%s766 + $0x8] sm:$0xff]
        %v769 = vld [vmem:[%s766 + $0x10] sm:$0xff]
        %v770 = vld [vmem:[%s766 + $0x18] sm:$0xff]
        %v771 = vld [vmem:[%s766 + $0x20] sm:$0xff]
        %v772 = vld [vmem:[%s766 + $0x28] sm:$0xff]
        %v773 = vld [vmem:[%s766 + $0x30] sm:$0xff]
        %v774 = vld [vmem:[%s766 + $0x38] sm:$0xff]
        %v775 = vld [vmem:[%s766 + $0x40] sm:$0xff]
        %v776 = vld [vmem:[%s766 + $0x48] sm:$0xff]
        %v777 = vld [vmem:[%s766 + $0x50] sm:$0xff]
        %v778 = vld [vmem:[%s766 + $0x58] sm:$0xff]
        %v779 = vld [vmem:[%s766 + $0x60] sm:$0xff]
        %v780 = vld [vmem:[%s766 + $0x68] sm:$0xff]
        %v781 = vld [vmem:[%s766 + $0x70] sm:$0xff]
        %v782 = vld [vmem:[%s766 + $0x78] sm:$0xff]
        %783 = vmatprep.subr.mxu0 0.0
        %784 = vmatpush1.msra.mxu0 %v782
        %785 = vmatprep.subr.mxu0 0.0
        %786 = vmatpush1.msra.mxu0 %v781
        %787 = vmatprep.subr.mxu0 0.0
        %788 = vmatpush1.msra.mxu0 %v780
        %789 = vmatprep.subr.mxu0 0.0
        %790 = vmatpush1.msra.mxu0 %v779
        %791 = vmatprep.subr.mxu0 0.0
        %792 = vmatpush1.msra.mxu0 %v778
        %793 = vmatprep.subr.mxu0 0.0
        %794 = vmatpush1.msra.mxu0 %v777
        %795 = vmatprep.subr.mxu0 0.0
        %796 = vmatpush1.msra.mxu0 %v776
        %797 = vmatprep.subr.mxu0 0.0
        %798 = vmatpush1.msra.mxu0 %v775
        %799 = vmatprep.subr.mxu0 0.0
        %800 = vmatpush1.msra.mxu0 %v774
        %801 = vmatprep.subr.mxu0 0.0
        %802 = vmatpush1.msra.mxu0 %v773
        %803 = vmatprep.subr.mxu0 0.0
        %804 = vmatpush1.msra.mxu0 %v772
        %805 = vmatprep.subr.mxu0 0.0
        %806 = vmatpush1.msra.mxu0 %v771
        %807 = vmatprep.subr.mxu0 0.0
        %808 = vmatpush1.msra.mxu0 %v770
        %809 = vmatprep.subr.mxu0 0.0
        %810 = vmatpush1.msra.mxu0 %v769
        %811 = vmatprep.subr.mxu0 0.0
        %812 = vmatpush1.msra.mxu0 %v768
        %813 = vmatprep.subr.mxu0 0.0
        %814 = vmatpush1.msra.mxu0 %v767
        %815 = vmatprep.subr.mxu0 0.0
        %816 = vmatpush2.msra.mxu0 0.0
        %817 = vmatprep.subr.mxu0 0.0
        %818 = vmatpush2.msra.mxu0 0.0
        %819 = vmatprep.subr.mxu0 0.0
        %820 = vmatpush2.msra.mxu0 0.0
        %821 = vmatprep.subr.mxu0 0.0
        %822 = vmatpush2.msra.mxu0 0.0
        %823 = vmatprep.subr.mxu0 0.0
        %824 = vmatpush2.msra.mxu0 0.0
        %825 = vmatprep.subr.mxu0 0.0
        %826 = vmatpush2.msra.mxu0 0.0
        %827 = vmatprep.subr.mxu0 0.0
        %828 = vmatpush2.msra.mxu0 0.0
        %829 = vmatprep.subr.mxu0 0.0
        %830 = vmatpush2.msra.mxu0 0.0
        %831 = vmatprep.subr.mxu0 0.0
        %832 = vmatpush2.msra.mxu0 0.0
        %833 = vmatprep.subr.mxu0 0.0
        %834 = vmatpush2.msra.mxu0 0.0
        %835 = vmatprep.subr.mxu0 0.0
        %836 = vmatpush2.msra.mxu0 0.0
        %837 = vmatprep.subr.mxu0 0.0
        %838 = vmatpush2.msra.mxu0 0.0
        %839 = vmatprep.subr.mxu0 0.0
        %840 = vmatpush2.msra.mxu0 0.0
        %841 = vmatprep.subr.mxu0 0.0
        %842 = vmatpush2.msra.mxu0 0.0
        %843 = vmatprep.subr.mxu0 0.0
        %844 = vmatpush2.msra.mxu0 0.0
        %845 = vmatprep.subr.mxu0 0.0
        %846 = vmatpush2.msra.mxu0 0.0
        %847 = vmatprep.mubr.f32.mxu0 0.0
        %848 = vmatmul.mubr.f32.gmra.mxu0 %v750
        %v849 = vpop.f32.mrf.mxu0
        %v850 = vadd.f32 0.0, %v849
        %v851 = vpop.f32.mrf.mxu0
        %852 = vmatprep.mubr.f32.mxu0 0.0
        %853 = vmatmul.mubr.f32.gmra.mxu0 %v751
        %v854 = vpop.f32.mrf.mxu0
        %v855 = vadd.f32 0.0, %v854
        %v856 = vpop.f32.mrf.mxu0
        %857 = vmatprep.mubr.f32.mxu0 0.0
        %858 = vmatmul.mubr.f32.gmra.mxu0 %v752
        %v859 = vpop.f32.mrf.mxu0
        %v860 = vadd.f32 0.0, %v859
        %v861 = vpop.f32.mrf.mxu0
        %862 = vmatprep.mubr.f32.mxu0 0.0
        %863 = vmatmul.mubr.f32.gmra.mxu0 %v753
        %v864 = vpop.f32.mrf.mxu0
        %v865 = vadd.f32 0.0, %v864
        %v866 = vpop.f32.mrf.mxu0
        %867 = vmatprep.mubr.f32.mxu0 0.0
        %868 = vmatmul.mubr.f32.gmra.mxu0 %v754
        %v869 = vpop.f32.mrf.mxu0
        %v870 = vadd.f32 0.0, %v869
        %v871 = vpop.f32.mrf.mxu0
        %872 = vmatprep.mubr.f32.mxu0 0.0
        %873 = vmatmul.mubr.f32.gmra.mxu0 %v755
        %v874 = vpop.f32.mrf.mxu0
        %v875 = vadd.f32 0.0, %v874
        %v876 = vpop.f32.mrf.mxu0
        %877 = vmatprep.mubr.f32.mxu0 0.0
        %878 = vmatmul.mubr.f32.gmra.mxu0 %v756
        %v879 = vpop.f32.mrf.mxu0
        %v880 = vadd.f32 0.0, %v879
        %v881 = vpop.f32.mrf.mxu0
        %882 = vmatprep.mubr.f32.mxu0 0.0
        %883 = vmatmul.mubr.f32.gmra.mxu0 %v757
        %v884 = vpop.f32.mrf.mxu0
        %v885 = vadd.f32 0.0, %v884
        %v886 = vpop.f32.mrf.mxu0
        %887 = vmatprep.mubr.f32.mxu0 0.0
        %888 = vmatmul.mubr.f32.gmra.mxu0 %v758
        %v889 = vpop.f32.mrf.mxu0
        %v890 = vadd.f32 0.0, %v889
        %v891 = vpop.f32.mrf.mxu0
        %892 = vmatprep.mubr.f32.mxu0 0.0
        %893 = vmatmul.mubr.f32.gmra.mxu0 %v759
        %v894 = vpop.f32.mrf.mxu0
        %v895 = vadd.f32 0.0, %v894
        %v896 = vpop.f32.mrf.mxu0
        %897 = vmatprep.mubr.f32.mxu0 0.0
        %898 = vmatmul.mubr.f32.gmra.mxu0 %v760
        %v899 = vpop.f32.mrf.mxu0
        %v900 = vadd.f32 0.0, %v899
        %v901 = vpop.f32.mrf.mxu0
        %902 = vmatprep.mubr.f32.mxu0 0.0
        %903 = vmatmul.mubr.f32.gmra.mxu0 %v761
        %v904 = vpop.f32.mrf.mxu0
        %v905 = vadd.f32 0.0, %v904
        %v906 = vpop.f32.mrf.mxu0
        %907 = vmatprep.mubr.f32.mxu0 0.0
        %908 = vmatmul.mubr.f32.gmra.mxu0 %v762
        %v909 = vpop.f32.mrf.mxu0
        %v910 = vadd.f32 0.0, %v909
        %v911 = vpop.f32.mrf.mxu0
        %912 = vmatprep.mubr.f32.mxu0 0.0
        %913 = vmatmul.mubr.f32.gmra.mxu0 %v763
        %v914 = vpop.f32.mrf.mxu0
        %v915 = vadd.f32 0.0, %v914
        %v916 = vpop.f32.mrf.mxu0
        %917 = vmatprep.mubr.f32.mxu0 0.0
        %918 = vmatmul.mubr.f32.gmra.mxu0 %v764
        %v919 = vpop.f32.mrf.mxu0
        %v920 = vadd.f32 0.0, %v919
        %v921 = vpop.f32.mrf.mxu0
        %922 = vmatprep.mubr.f32.mxu0 0.0
        %923 = vmatmul.mubr.f32.gmra.mxu0 %v765
        %v924 = vpop.f32.mrf.mxu0
        %v925 = vadd.f32 0.0, %v924
        %v926 = vpop.f32.mrf.mxu0
        %927 = vdwg.mxu0
        %v928 = vadd.f32 %v734, %v850
        %v929 = vadd.f32 %v735, %v855
        %v930 = vadd.f32 %v736, %v860
        %v931 = vadd.f32 %v737, %v865
        %v932 = vadd.f32 %v738, %v870
        %v933 = vadd.f32 %v739, %v875
        %v934 = vadd.f32 %v740, %v880
        %v935 = vadd.f32 %v741, %v885
        %v936 = vadd.f32 %v742, %v890
        %v937 = vadd.f32 %v743, %v895
        %v938 = vadd.f32 %v744, %v900
        %v939 = vadd.f32 %v745, %v905
        %v940 = vadd.f32 %v746, %v910
        %v941 = vadd.f32 %v747, %v915
        %v942 = vadd.f32 %v748, %v920
        %v943 = vadd.f32 %v749, %v925
        %944 = vst [vmem:[#allocation4] sm:$0xff] %v928
        %945 = vst [vmem:[#allocation4 + $0x8] sm:$0xff] %v929
        %946 = vst [vmem:[#allocation4 + $0x10] sm:$0xff] %v930
        %947 = vst [vmem:[#allocation4 + $0x18] sm:$0xff] %v931
        %948 = vst [vmem:[#allocation4 + $0x20] sm:$0xff] %v932
        %949 = vst [vmem:[#allocation4 + $0x28] sm:$0xff] %v933
        %950 = vst [vmem:[#allocation4 + $0x30] sm:$0xff] %v934
        %951 = vst [vmem:[#allocation4 + $0x38] sm:$0xff] %v935
        %952 = vst [vmem:[#allocation4 + $0x40] sm:$0xff] %v936
        %953 = vst [vmem:[#allocation4 + $0x48] sm:$0xff] %v937
        %954 = vst [vmem:[#allocation4 + $0x50] sm:$0xff] %v938
        %955 = vst [vmem:[#allocation4 + $0x58] sm:$0xff] %v939
        %956 = vst [vmem:[#allocation4 + $0x60] sm:$0xff] %v940
        %957 = vst [vmem:[#allocation4 + $0x68] sm:$0xff] %v941
        %958 = vst [vmem:[#allocation4 + $0x70] sm:$0xff] %v942
        %959 = vst [vmem:[#allocation4 + $0x78] sm:$0xff] %v943
        %p960 = pnand %p315, %p318
        %p961 = pneg %p960
        // Predicated region
        $region73: #{tpu_custom_call.1} parent=43 // pred_check
          _
        $region74: #{tpu_custom_call.1} parent=43 // pred_check_branch
          %963 = sbr.rel (%p960) target = $region76
        $region75: #{tpu_custom_call.1} parent=43 // pred_region
          %v964 = vld [vmem:[#allocation4] sm:$0xff]
          %v965 = vld [vmem:[#allocation4 + $0x8] sm:$0xff]
          %v966 = vld [vmem:[#allocation4 + $0x10] sm:$0xff]
          %v967 = vld [vmem:[#allocation4 + $0x18] sm:$0xff]
          %v968 = vld [vmem:[#allocation4 + $0x20] sm:$0xff]
          %v969 = vld [vmem:[#allocation4 + $0x28] sm:$0xff]
          %v970 = vld [vmem:[#allocation4 + $0x30] sm:$0xff]
          %v971 = vld [vmem:[#allocation4 + $0x38] sm:$0xff]
          %v972 = vld [vmem:[#allocation4 + $0x40] sm:$0xff]
          %v973 = vld [vmem:[#allocation4 + $0x48] sm:$0xff]
          %v974 = vld [vmem:[#allocation4 + $0x50] sm:$0xff]
          %v975 = vld [vmem:[#allocation4 + $0x58] sm:$0xff]
          %v976 = vld [vmem:[#allocation4 + $0x60] sm:$0xff]
          %v977 = vld [vmem:[#allocation4 + $0x68] sm:$0xff]
          %v978 = vld [vmem:[#allocation4 + $0x70] sm:$0xff]
          %v979 = vld [vmem:[#allocation4 + $0x78] sm:$0xff]
          %v980 = vld [vmem:[%s3] sm:$0x1]
          %v982 = vlaneseq
          %v983 = vshrl.u32 %v982, 7
          %v984 = vsub.s32 0, %v983
          %v985 = vrot.slane %v980, %v984
          %v987 = vadd.f32 %v964, %v985
          %v988 = vadd.f32 %v965, %v985
          %v989 = vadd.f32 %v966, %v985
          %v990 = vadd.f32 %v967, %v985
          %v991 = vadd.f32 %v968, %v985
          %v992 = vadd.f32 %v969, %v985
          %v993 = vadd.f32 %v970, %v985
          %v994 = vadd.f32 %v971, %v985
          %v995 = vadd.f32 %v972, %v985
          %v996 = vadd.f32 %v973, %v985
          %v997 = vadd.f32 %v974, %v985
          %v998 = vadd.f32 %v975, %v985
          %v999 = vadd.f32 %v976, %v985
          %v1000 = vadd.f32 %v977, %v985
          %v1001 = vadd.f32 %v978, %v985
          %v1002 = vadd.f32 %v979, %v985
          %v1003 = vmax.f32 %v987, 0.0
          %v1004 = vmax.f32 %v988, 0.0
          %v1005 = vmax.f32 %v989, 0.0
          %v1006 = vmax.f32 %v990, 0.0
          %v1007 = vmax.f32 %v991, 0.0
          %v1008 = vmax.f32 %v992, 0.0
          %v1009 = vmax.f32 %v993, 0.0
          %v1010 = vmax.f32 %v994, 0.0
          %v1011 = vmax.f32 %v995, 0.0
          %v1012 = vmax.f32 %v996, 0.0
          %v1013 = vmax.f32 %v997, 0.0
          %v1014 = vmax.f32 %v998, 0.0
          %v1015 = vmax.f32 %v999, 0.0
          %v1016 = vmax.f32 %v1000, 0.0
          %v1017 = vmax.f32 %v1001, 0.0
          %v1018 = vmax.f32 %v1002, 0.0
          %s1019 = smul.u32 %s27, 128
          %s1020 = scalar_lea.vmem [#allocation3], %s1019
          %1021 = vst [vmem:[%s1020] sm:$0xff] %v1003
          %1022 = vst [vmem:[%s1020 + $0x8] sm:$0xff] %v1004
          %1023 = vst [vmem:[%s1020 + $0x10] sm:$0xff] %v1005
          %1024 = vst [vmem:[%s1020 + $0x18] sm:$0xff] %v1006
          %1025 = vst [vmem:[%s1020 + $0x20] sm:$0xff] %v1007
          %1026 = vst [vmem:[%s1020 + $0x28] sm:$0xff] %v1008
          %1027 = vst [vmem:[%s1020 + $0x30] sm:$0xff] %v1009
          %1028 = vst [vmem:[%s1020 + $0x38] sm:$0xff] %v1010
          %1029 = vst [vmem:[%s1020 + $0x40] sm:$0xff] %v1011
          %1030 = vst [vmem:[%s1020 + $0x48] sm:$0xff] %v1012
          %1031 = vst [vmem:[%s1020 + $0x50] sm:$0xff] %v1013
          %1032 = vst [vmem:[%s1020 + $0x58] sm:$0xff] %v1014
          %1033 = vst [vmem:[%s1020 + $0x60] sm:$0xff] %v1015
          %1034 = vst [vmem:[%s1020 + $0x68] sm:$0xff] %v1016
          %1035 = vst [vmem:[%s1020 + $0x70] sm:$0xff] %v1017
          %1036 = vst [vmem:[%s1020 + $0x78] sm:$0xff] %v1018
          %1037 = vst [vmem:[#allocation13] sm:$0xff] %v1003
          %1038 = vst [vmem:[#allocation13 + $0x8] sm:$0xff] %v1004
          %1039 = vst [vmem:[#allocation13 + $0x10] sm:$0xff] %v1005
          %1040 = vst [vmem:[#allocation13 + $0x18] sm:$0xff] %v1006
          %1041 = vst [vmem:[#allocation13 + $0x20] sm:$0xff] %v1007
          %1042 = vst [vmem:[#allocation13 + $0x28] sm:$0xff] %v1008
          %1043 = vst [vmem:[#allocation13 + $0x30] sm:$0xff] %v1009
          %1044 = vst [vmem:[#allocation13 + $0x38] sm:$0xff] %v1010
          %1045 = vst [vmem:[#allocation13 + $0x40] sm:$0xff] %v1011
          %1046 = vst [vmem:[#allocation13 + $0x48] sm:$0xff] %v1012
          %1047 = vst [vmem:[#allocation13 + $0x50] sm:$0xff] %v1013
          %1048 = vst [vmem:[#allocation13 + $0x58] sm:$0xff] %v1014
          %1049 = vst [vmem:[#allocation13 + $0x60] sm:$0xff] %v1015
          %1050 = vst [vmem:[#allocation13 + $0x68] sm:$0xff] %v1016
          %1051 = vst [vmem:[#allocation13 + $0x70] sm:$0xff] %v1017
          %1052 = vst [vmem:[#allocation13 + $0x78] sm:$0xff] %v1018
        $region76: #{tpu_custom_call.1} parent=43 // pred_fallthru
          _
        %p1053 = pnand %p315, %p516
        %p1054 = pneg %p1053
        // Predicated region
        $region77: #{tpu_custom_call.1} parent=43 // pred_check
          _
        $region78: #{tpu_custom_call.1} parent=43 // pred_check_branch
          %1056 = sbr.rel (%p1053) target = $region80
        $region79: #{tpu_custom_call.1} parent=43 // pred_region
          %v1057 = vld [vmem:[#allocation4] sm:$0xff]
          %v1058 = vld [vmem:[#allocation4 + $0x8] sm:$0xff]
          %v1059 = vld [vmem:[#allocation4 + $0x10] sm:$0xff]
          %v1060 = vld [vmem:[#allocation4 + $0x18] sm:$0xff]
          %v1061 = vld [vmem:[#allocation4 + $0x20] sm:$0xff]
          %v1062 = vld [vmem:[#allocation4 + $0x28] sm:$0xff]
          %v1063 = vld [vmem:[#allocation4 + $0x30] sm:$0xff]
          %v1064 = vld [vmem:[#allocation4 + $0x38] sm:$0xff]
          %v1065 = vld [vmem:[#allocation4 + $0x40] sm:$0xff]
          %v1066 = vld [vmem:[#allocation4 + $0x48] sm:$0xff]
          %v1067 = vld [vmem:[#allocation4 + $0x50] sm:$0xff]
          %v1068 = vld [vmem:[#allocation4 + $0x58] sm:$0xff]
          %v1069 = vld [vmem:[#allocation4 + $0x60] sm:$0xff]
          %v1070 = vld [vmem:[#allocation4 + $0x68] sm:$0xff]
          %v1071 = vld [vmem:[#allocation4 + $0x70] sm:$0xff]
          %v1072 = vld [vmem:[#allocation4 + $0x78] sm:$0xff]
          %v1073 = vld [vmem:[%s5] sm:$0x1]
          %v1075 = vlaneseq
          %v1076 = vshrl.u32 %v1075, 7
          %v1077 = vsub.s32 0, %v1076
          %v1078 = vrot.slane %v1073, %v1077
          %v1080 = vadd.f32 %v1057, %v1078
          %v1081 = vadd.f32 %v1058, %v1078
          %v1082 = vadd.f32 %v1059, %v1078
          %v1083 = vadd.f32 %v1060, %v1078
          %v1084 = vadd.f32 %v1061, %v1078
          %v1085 = vadd.f32 %v1062, %v1078
          %v1086 = vadd.f32 %v1063, %v1078
          %v1087 = vadd.f32 %v1064, %v1078
          %v1088 = vadd.f32 %v1065, %v1078
          %v1089 = vadd.f32 %v1066, %v1078
          %v1090 = vadd.f32 %v1067, %v1078
          %v1091 = vadd.f32 %v1068, %v1078
          %v1092 = vadd.f32 %v1069, %v1078
          %v1093 = vadd.f32 %v1070, %v1078
          %v1094 = vadd.f32 %v1071, %v1078
          %v1095 = vadd.f32 %v1072, %v1078
          %1096 = vst [vmem:[#allocation13] sm:$0xff] %v1080
          %1097 = vst [vmem:[#allocation13 + $0x8] sm:$0xff] %v1081
          %1098 = vst [vmem:[#allocation13 + $0x10] sm:$0xff] %v1082
          %1099 = vst [vmem:[#allocation13 + $0x18] sm:$0xff] %v1083
          %1100 = vst [vmem:[#allocation13 + $0x20] sm:$0xff] %v1084
          %1101 = vst [vmem:[#allocation13 + $0x28] sm:$0xff] %v1085
          %1102 = vst [vmem:[#allocation13 + $0x30] sm:$0xff] %v1086
          %1103 = vst [vmem:[#allocation13 + $0x38] sm:$0xff] %v1087
          %1104 = vst [vmem:[#allocation13 + $0x40] sm:$0xff] %v1088
          %1105 = vst [vmem:[#allocation13 + $0x48] sm:$0xff] %v1089
          %1106 = vst [vmem:[#allocation13 + $0x50] sm:$0xff] %v1090
          %1107 = vst [vmem:[#allocation13 + $0x58] sm:$0xff] %v1091
          %1108 = vst [vmem:[#allocation13 + $0x60] sm:$0xff] %v1092
          %1109 = vst [vmem:[#allocation13 + $0x68] sm:$0xff] %v1093
          %1110 = vst [vmem:[#allocation13 + $0x70] sm:$0xff] %v1094
          %1111 = vst [vmem:[#allocation13 + $0x78] sm:$0xff] %v1095
        $region80: #{tpu_custom_call.1} parent=43 // pred_fallthru
          _
        // Predicated region
        $region81: #{tpu_custom_call.1} parent=43 // pred_check
          %p1112 = pneg %p191
        $region82: #{tpu_custom_call.1} parent=43 // pred_check_branch
          %1114 = sbr.rel (%p1112) target = $region84
        $region83: #{tpu_custom_call.1} parent=43 // pred_region
          %s1115 = smul.u32 16, %s27
          %s1117 = ssub.s32 2048, 2048
          %1118 = vsyncadd [#allocation7], %s1117
          %s1119 = smul.addr %s1115, 128
          %s1120 = scalar_lea.hbm %s6, %s1119
          %s1121 = sshll.u32 [#allocation13], 4
          %s1122 = int_to_ptr.vmem [resolvable:$true] %s1121
          %1127 = dma.vmem_to_hbm [thread:$0]  %s1122, 2048, %s1120, [#allocation7], 128, 128, 8
        $region84: #{tpu_custom_call.1} parent=43 // pred_fallthru
          _
        // Predicated region
        $region85: #{tpu_custom_call.1} parent=43 // pred_check
          %p1128 = pneg %p191
        $region86: #{tpu_custom_call.1} parent=43 // pred_check_branch
          %1130 = sbr.rel (%p1128) target = $region88
        $region87: #{tpu_custom_call.1} parent=43 // pred_region
          %1131 = dma.done [#allocation7], 2048
        $region88: #{tpu_custom_call.1} parent=43 // pred_fallthru
          _
      $region44: #{tpu_custom_call.1} parent=5 // pred_fallthru
        _
      %p1132 = scmp.le.s32.totalorder 2, %s16
      // Predicated region
      $region89: #{tpu_custom_call.1} parent=5 // pred_check
        %p1133 = pneg %p1132
      $region90: #{tpu_custom_call.1} parent=5 // pred_check_branch
        %1135 = sbr.rel (%p1133) target = $region92
      $region91: #{tpu_custom_call.1} parent=5 // pred_region
        %s1136 = ssub.s32 %s16, 2
      $region92: #{tpu_custom_call.1} parent=5 // pred_fallthru
        _
    $region6: #{tpu_custom_call.1} parent=1 // loop_footer
      %s20 = sadd.s32 1, %s16
    $region7: #{tpu_custom_call.1} parent=1 // loop_footer_branch
      %15 = sbr.rel target = $region3
    $region8: #{tpu_custom_call.1} parent=1 // loop_exit
      _
    %1137 = vsyncpa [#allocation6], 1
    %s1138 = scalar_lea.sflag [#allocation6], 1
    %1139 = vsyncpa %s1138, 1
    %1140 = vsyncpa [#allocation9], 1
    %1141 = vsyncpa [#allocation12], 1
    %1142 = vsyncpa [#allocation7], 1
    %s1143 = scalar_lea.sflag [#allocation7], 1
    %1144 = vsyncpa %s1143, 1

</llo_original>
